<compile_context>
chip_gen: v5e
topology: v5e:2x2
jax: 0.10.0
libtpu: 0.0.40
codegen_flags: <defaults>
</compile_context>

<pallas_src>
import numpy as np
import jax
import jax.numpy as jnp
from jax import lax
from jax.experimental import pallas as pl
from jax.experimental.pallas import tpu as pltpu


# ----------------------------------------------------------------------------
# Kernel construction (numpy port of get_kernel; deterministic, no torch).
# ----------------------------------------------------------------------------
def get_kernel(factor, kernel_type, phase, kernel_width, support=None, sigma=None):
    assert kernel_type in ["lanczos", "gauss", "box"]
    if phase == 0.5 and kernel_type != "box":
        kernel = np.zeros([kernel_width - 1, kernel_width - 1])
    else:
        kernel = np.zeros([kernel_width, kernel_width])
    if kernel_type == "box":
        assert phase == 0.5
        kernel[:] = 1.0 / (kernel_width * kernel_width)
    elif kernel_type == "gauss":
        assert sigma
        assert phase != 0.5
        center = (kernel_width + 1.0) / 2.0
        sigma_sq = sigma * sigma
        for i in range(1, kernel.shape[0] + 1):
            for j in range(1, kernel.shape[1] + 1):
                di = (i - center) / 2.0
                dj = (j - center) / 2.0
                kernel[i - 1][j - 1] = np.exp(-(di * di + dj * dj) / (2 * sigma_sq))
                kernel[i - 1][j - 1] = kernel[i - 1][j - 1] / (2.0 * np.pi * sigma_sq)
    elif kernel_type == "lanczos":
        assert support
        center = (kernel_width + 1) / 2.0
        for i in range(1, kernel.shape[0] + 1):
            for j in range(1, kernel.shape[1] + 1):
                if phase == 0.5:
                    di = abs(i + 0.5 - center) / factor
                    dj = abs(j + 0.5 - center) / factor
                else:
                    di = abs(i - center) / factor
                    dj = abs(j - center) / factor
                val = 1
                if di != 0:
                    val = val * support * np.sin(np.pi * di) * np.sin(np.pi * di / support)
                    val = val / (np.pi * np.pi * di * di)
                if dj != 0:
                    val = val * support * np.sin(np.pi * dj) * np.sin(np.pi * dj / support)
                    val = val / (np.pi * np.pi * dj * dj)
                kernel[i - 1][j - 1] = val
    else:
        assert False
    kernel /= kernel.sum()
    return kernel


# ----------------------------------------------------------------------------
# Host-side helpers
# ----------------------------------------------------------------------------
def _resampling_matrix(in_size, out_size, k1d, factor, pad):
    """Dense banded matrix R (out_size, in_size) such that (R @ v)[o] equals
    the strided 1D correlation of the replication-padded v with k1d."""
    K = k1d.shape[0]
    R = np.zeros((out_size, in_size), dtype=np.float64)
    for o in range(out_size):
        for t in range(K):
            src = o * factor + t - pad
            src = min(max(src, 0), in_size - 1)  # fold replication padding
            R[o, src] += k1d[t]
    return R


def _pick_block_batch(nc, bytes_per_slice, vmem_budget_bytes=6 * 1024 * 1024,
                      min_grid=2, max_unroll=8):
    """Largest divisor of nc whose double-buffered block fits the VMEM budget,
    keeping >= min_grid grid steps (megacore / pipelining) and a bounded
    in-kernel unroll."""
    max_b = max(1, vmem_budget_bytes // max(1, 2 * bytes_per_slice))
    max_b = min(max_b, max_unroll)
    if nc >= min_grid:
        max_b = min(max_b, max(1, nc // min_grid))
    best = 1
    for d in range(1, nc + 1):
        if nc % d == 0 and d <= max_b:
            best = d
    return best


# ----------------------------------------------------------------------------
# Pallas kernel body: B image slices per grid step, two MXU matmuls each.
# ----------------------------------------------------------------------------
def _make_downsample_kernel(B):
    def kernel_fn(x_ref, rh_ref, rwt_ref, o_ref):
        # x_ref:   (B, H, W)      image slices (VMEM)
        # rh_ref:  (Hout, H)      row-resampling matrix (resident in VMEM)
        # rwt_ref: (W, Wout)      col-resampling matrix, transposed (resident)
        # o_ref:   (B, Hout, Wout)
        rh = rh_ref[...]
        rwt = rwt_ref[...]
        for b in range(B):  # bounded static unroll (B <= 8)
            y = jnp.dot(rh, x_ref[b],
                        preferred_element_type=jnp.float32,
                        precision=lax.Precision.HIGHEST)        # (Hout, W)
            y = y.astype(rwt.dtype)
            o_ref[b] = jnp.dot(y, rwt,
                               preferred_element_type=jnp.float32,
                               precision=lax.Precision.HIGHEST
                               ).astype(o_ref.dtype)            # (Hout, Wout)
    return kernel_fn


# ----------------------------------------------------------------------------
# Pallas downsampler (forward-equivalent to the PyTorch Downsampler module)
# ----------------------------------------------------------------------------
class DownsamplerPallas:
    def __init__(self, n_planes, factor, kernel_type, phase=0,
                 kernel_width=None, support=None, sigma=None, preserve_size=False):
        assert phase in [0, 0.5]
        if kernel_type == "lanczos2":
            support, kernel_width, kernel_type_ = 2, 4 * factor + 1, "lanczos"
        elif kernel_type == "lanczos3":
            support, kernel_width, kernel_type_ = 3, 6 * factor + 1, "lanczos"
        elif kernel_type == "gauss12":
            kernel_width, sigma, kernel_type_ = 7, 1 / 2, "gauss"
        elif kernel_type == "gauss1sq2":
            kernel_width, sigma, kernel_type_ = 9, 1.0 / np.sqrt(2), "gauss"
        elif kernel_type in ["lanczos", "gauss", "box"]:
            kernel_type_ = kernel_type
        else:
            assert False, "wrong name kernel"

        self.factor = factor
        self.n_planes = n_planes
        self.preserve_size = preserve_size
        self.kernel = get_kernel(factor, kernel_type_, phase, kernel_width,
                                 support=support, sigma=sigma)
        self.K = self.kernel.shape[0]
        if preserve_size:
            if self.K % 2 == 1:
                self.pad = int((self.K - 1) / 2.0)
            else:
                self.pad = int((self.K - factor) / 2.0)
        else:
            self.pad = 0

        # Separable factorisation. Every get_kernel kernel is a rank-1 outer
        # product whose total sum is 1, so the row/col sums recover the 1D
        # factors exactly: outer(row_sums, col_sums) == kernel.
        k2d = self.kernel
        kv = k2d.sum(axis=1)   # height (H) factor
        kh = k2d.sum(axis=0)   # width  (W) factor
        assert np.allclose(np.outer(kv, kh), k2d, rtol=1e-6, atol=1e-9), \
            "resampling kernel is not separable"
        self.kv, self.kh = kv, kh
        self._r_cache = {}

    def _get_r_matrices(self, H, W, Hout, Wout, dtype):
        key = (H, W, str(dtype))
        if key not in self._r_cache:
            r_h = _resampling_matrix(H, Hout, self.kv, self.factor, self.pad)
            r_wt = _resampling_matrix(W, Wout, self.kh, self.factor, self.pad).T
            self._r_cache[key] = (jnp.asarray(r_h, dtype=dtype),
                                  jnp.asarray(np.ascontiguousarray(r_wt), dtype=dtype))
        return self._r_cache[key]

    def __call__(self, x):
        # x: (N, C, H, W)
        N, C, H, W = x.shape
        assert C == self.n_planes
        f, K, pad = self.factor, self.K, self.pad

        Hout = (H + 2 * pad - K) // f + 1
        Wout = (W + 2 * pad - K) // f + 1
        assert Hout > 0 and Wout > 0

        r_h, r_wt = self._get_r_matrices(H, W, Hout, Wout, x.dtype)

        NC = N * C
        x_flat = x.reshape(NC, H, W)

        bytes_per_slice = (H * W + Hout * Wout) * jnp.dtype(x.dtype).itemsize
        B = _pick_block_batch(NC, bytes_per_slice)
        grid = (NC // B,)

        kernel_fn = _make_downsample_kernel(B)

        out_flat = pl.pallas_call(
            kernel_fn,
            out_shape=jax.ShapeDtypeStruct((NC, Hout, Wout), x.dtype),
            grid=grid,
            in_specs=[
                pl.BlockSpec((B, H, W), lambda i: (i, 0, 0)),   # image slices
                pl.BlockSpec((Hout, H), lambda i: (0, 0)),      # R_h (resident)
                pl.BlockSpec((W, Wout), lambda i: (0, 0)),      # R_w^T (resident)
            ],
            out_specs=pl.BlockSpec((B, Hout, Wout), lambda i: (i, 0, 0)),
            compiler_params=pltpu.CompilerParams(
                dimension_semantics=("parallel",)),
        )(x_flat, r_h, r_wt)

        # bias is zero in the reference module -> nothing to add.
        return out_flat.reshape(N, C, Hout, Wout)


# ----------------------------------------------------------------------------
# Exact (float64, numpy) reference for verification.
# ----------------------------------------------------------------------------
def reference_downsample_np(x, k2d, factor, pad):
    x = np.asarray(x, dtype=np.float64)
    K = k2d.shape[0]
    if pad > 0:
        x = np.pad(x, ((0, 0), (0, 0), (pad, pad), (pad, pad)), mode="edge")
    N, C, Hp, Wp = x.shape
    Hout = (Hp - K) // factor + 1
    Wout = (Wp - K) // factor + 1
    out = np.zeros((N, C, Hout, Wout), dtype=np.float64)
    for i in range(K):
        for j in range(K):
            out += k2d[i, j] * x[:, :,
                                 i:i + factor * Hout:factor,
                                 j:j + factor * Wout:factor]
    return out


if __name__ == "__main__":
    # Small, deterministic config: lanczos2, factor 2 -> kernel 9x9, pad 4.
    N, C, H, W = 2, 4, 16, 16
    factor = 2

    key = jax.random.PRNGKey(0)
    x = jax.random.normal(key, (N, C, H, W), dtype=jnp.float32)

    ds = DownsamplerPallas(n_planes=C, factor=factor, kernel_type="lanczos2",
                           phase=0, preserve_size=True)
    out = jax.block_until_ready(ds(x))

    ref = reference_downsample_np(np.asarray(x), ds.kernel, factor, ds.pad)
    assert out.shape == (N, C, H // factor, W // factor)
    np.testing.assert_allclose(np.asarray(out), ref, rtol=1e-5, atol=1e-5)

    print("KERNEL_OK")
</pallas_src>

<mosaic_0001>
module attributes {stable_mosaic.version = 11 : i64} {
  func.func @kernel_fn(%arg0: i32, %arg1: memref<4x16x16xf32, #tpu.memory_space<vmem>>, %arg2: memref<8x16xf32, #tpu.memory_space<vmem>>, %arg3: memref<16x8xf32, #tpu.memory_space<vmem>>, %arg4: memref<4x8x8xf32, #tpu.memory_space<vmem>>) attributes {dimension_semantics = [#tpu.dimension_semantics<parallel>], iteration_bounds = array<i64: 2>, scalar_prefetch = 0 : i64, scratch_operands = 0 : i64, tpu.core_type = #tpu.core_type<tc>, window_params = [{transform_indices = @transform_0, window_bounds = array<i64: 4, 16, 16>}, {pipeline_mode = #tpu.pipeline_mode<synchronous>, transform_indices = @transform_1, window_bounds = array<i64: 8, 16>}, {pipeline_mode = #tpu.pipeline_mode<synchronous>, transform_indices = @transform_2, window_bounds = array<i64: 16, 8>}, {transform_indices = @transform_3, window_bounds = array<i64: 4, 8, 8>}]} {
    %c0 = arith.constant 0 : index
    %c0_0 = arith.constant 0 : index
    %0 = vector.load %arg2[%c0, %c0_0] : memref<8x16xf32, #tpu.memory_space<vmem>>, vector<8x16xf32>
    %c0_1 = arith.constant 0 : index
    %c0_2 = arith.constant 0 : index
    %1 = vector.load %arg3[%c0_1, %c0_2] : memref<16x8xf32, #tpu.memory_space<vmem>>, vector<16x8xf32>
    %c0_3 = arith.constant 0 : index
    %c0_4 = arith.constant 0 : index
    %c0_5 = arith.constant 0 : index
    %2 = vector.load %arg1[%c0_3, %c0_4, %c0_5] : memref<4x16x16xf32, #tpu.memory_space<vmem>>, vector<1x16x16xf32>
    %3 = vector.shape_cast %2 : vector<1x16x16xf32> to vector<16x16xf32>
    %cst = arith.constant dense<0.000000e+00> : vector<8x16xf32>
    %4 = tpu.matmul %0, %3, %cst {dimension_numbers = #tpu.dot_dimension_numbers<[1], [0], [0], [1], [0, 0, 1, 1], [], []>, precision = #tpu.contract_precision<fp32>} : vector<8x16xf32>, vector<16x16xf32>, vector<8x16xf32> -> vector<8x16xf32>
    %cst_6 = arith.constant dense<0.000000e+00> : vector<8x8xf32>
    %5 = tpu.matmul %4, %1, %cst_6 {dimension_numbers = #tpu.dot_dimension_numbers<[1], [0], [0], [1], [0, 0, 1, 1], [], []>, precision = #tpu.contract_precision<fp32>} : vector<8x16xf32>, vector<16x8xf32>, vector<8x8xf32> -> vector<8x8xf32>
    %c0_7 = arith.constant 0 : index
    %c0_8 = arith.constant 0 : index
    %c0_9 = arith.constant 0 : index
    %6 = vector.load %arg4[%c0_7, %c0_8, %c0_9] : memref<4x8x8xf32, #tpu.memory_space<vmem>>, vector<1x8x8xf32>
    %7 = vector.shape_cast %6 : vector<1x8x8xf32> to vector<8x8xf32>
    %8 = vector.shape_cast %5 : vector<8x8xf32> to vector<1x8x8xf32>
    tpu.vector_store %arg4[%c0_7, %c0_8, %c0_9], %8 {strides = array<i32>} : memref<4x8x8xf32, #tpu.memory_space<vmem>>, vector<1x8x8xf32>,
    %c1 = arith.constant 1 : index
    %c0_10 = arith.constant 0 : index
    %c0_11 = arith.constant 0 : index
    %9 = vector.load %arg1[%c1, %c0_10, %c0_11] : memref<4x16x16xf32, #tpu.memory_space<vmem>>, vector<1x16x16xf32>
    %10 = vector.shape_cast %9 : vector<1x16x16xf32> to vector<16x16xf32>
    %cst_12 = arith.constant dense<0.000000e+00> : vector<8x16xf32>
    %11 = tpu.matmul %0, %10, %cst_12 {dimension_numbers = #tpu.dot_dimension_numbers<[1], [0], [0], [1], [0, 0, 1, 1], [], []>, precision = #tpu.contract_precision<fp32>} : vector<8x16xf32>, vector<16x16xf32>, vector<8x16xf32> -> vector<8x16xf32>
    %cst_13 = arith.constant dense<0.000000e+00> : vector<8x8xf32>
    %12 = tpu.matmul %11, %1, %cst_13 {dimension_numbers = #tpu.dot_dimension_numbers<[1], [0], [0], [1], [0, 0, 1, 1], [], []>, precision = #tpu.contract_precision<fp32>} : vector<8x16xf32>, vector<16x8xf32>, vector<8x8xf32> -> vector<8x8xf32>
    %c1_14 = arith.constant 1 : index
    %c0_15 = arith.constant 0 : index
    %c0_16 = arith.constant 0 : index
    %13 = vector.load %arg4[%c1_14, %c0_15, %c0_16] : memref<4x8x8xf32, #tpu.memory_space<vmem>>, vector<1x8x8xf32>
    %14 = vector.shape_cast %13 : vector<1x8x8xf32> to vector<8x8xf32>
    %15 = vector.shape_cast %12 : vector<8x8xf32> to vector<1x8x8xf32>
    tpu.vector_store %arg4[%c1_14, %c0_15, %c0_16], %15 {strides = array<i32>} : memref<4x8x8xf32, #tpu.memory_space<vmem>>, vector<1x8x8xf32>,
    %c2 = arith.constant 2 : index
    %c0_17 = arith.constant 0 : index
    %c0_18 = arith.constant 0 : index
    %16 = vector.load %arg1[%c2, %c0_17, %c0_18] : memref<4x16x16xf32, #tpu.memory_space<vmem>>, vector<1x16x16xf32>
    %17 = vector.shape_cast %16 : vector<1x16x16xf32> to vector<16x16xf32>
    %cst_19 = arith.constant dense<0.000000e+00> : vector<8x16xf32>
    %18 = tpu.matmul %0, %17, %cst_19 {dimension_numbers = #tpu.dot_dimension_numbers<[1], [0], [0], [1], [0, 0, 1, 1], [], []>, precision = #tpu.contract_precision<fp32>} : vector<8x16xf32>, vector<16x16xf32>, vector<8x16xf32> -> vector<8x16xf32>
    %cst_20 = arith.constant dense<0.000000e+00> : vector<8x8xf32>
    %19 = tpu.matmul %18, %1, %cst_20 {dimension_numbers = #tpu.dot_dimension_numbers<[1], [0], [0], [1], [0, 0, 1, 1], [], []>, precision = #tpu.contract_precision<fp32>} : vector<8x16xf32>, vector<16x8xf32>, vector<8x8xf32> -> vector<8x8xf32>
    %c2_21 = arith.constant 2 : index
    %c0_22 = arith.constant 0 : index
    %c0_23 = arith.constant 0 : index
    %20 = vector.load %arg4[%c2_21, %c0_22, %c0_23] : memref<4x8x8xf32, #tpu.memory_space<vmem>>, vector<1x8x8xf32>
    %21 = vector.shape_cast %20 : vector<1x8x8xf32> to vector<8x8xf32>
    %22 = vector.shape_cast %19 : vector<8x8xf32> to vector<1x8x8xf32>
    tpu.vector_store %arg4[%c2_21, %c0_22, %c0_23], %22 {strides = array<i32>} : memref<4x8x8xf32, #tpu.memory_space<vmem>>, vector<1x8x8xf32>,
    %c3 = arith.constant 3 : index
    %c0_24 = arith.constant 0 : index
    %c0_25 = arith.constant 0 : index
    %23 = vector.load %arg1[%c3, %c0_24, %c0_25] : memref<4x16x16xf32, #tpu.memory_space<vmem>>, vector<1x16x16xf32>
    %24 = vector.shape_cast %23 : vector<1x16x16xf32> to vector<16x16xf32>
    %cst_26 = arith.constant dense<0.000000e+00> : vector<8x16xf32>
    %25 = tpu.matmul %0, %24, %cst_26 {dimension_numbers = #tpu.dot_dimension_numbers<[1], [0], [0], [1], [0, 0, 1, 1], [], []>, precision = #tpu.contract_precision<fp32>} : vector<8x16xf32>, vector<16x16xf32>, vector<8x16xf32> -> vector<8x16xf32>
    %cst_27 = arith.constant dense<0.000000e+00> : vector<8x8xf32>
    %26 = tpu.matmul %25, %1, %cst_27 {dimension_numbers = #tpu.dot_dimension_numbers<[1], [0], [0], [1], [0, 0, 1, 1], [], []>, precision = #tpu.contract_precision<fp32>} : vector<8x16xf32>, vector<16x8xf32>, vector<8x8xf32> -> vector<8x8xf32>
    %c3_28 = arith.constant 3 : index
    %c0_29 = arith.constant 0 : index
    %c0_30 = arith.constant 0 : index
    %27 = vector.load %arg4[%c3_28, %c0_29, %c0_30] : memref<4x8x8xf32, #tpu.memory_space<vmem>>, vector<1x8x8xf32>
    %28 = vector.shape_cast %27 : vector<1x8x8xf32> to vector<8x8xf32>
    %29 = vector.shape_cast %26 : vector<8x8xf32> to vector<1x8x8xf32>
    tpu.vector_store %arg4[%c3_28, %c0_29, %c0_30], %29 {strides = array<i32>} : memref<4x8x8xf32, #tpu.memory_space<vmem>>, vector<1x8x8xf32>,
    return
  }
  func.func @transform_0(%arg0: i32) -> (i32, i32, i32) {
    %c0_i32 = arith.constant 0 : i32
    %c0_i32_0 = arith.constant 0 : i32
    %c0_i32_1 = arith.constant 0 : i32
    return %arg0, %c0_i32, %c0_i32_0 : i32, i32, i32
  }
  func.func @transform_1(%arg0: i32) -> (i32, i32) {
    %c0_i32 = arith.constant 0 : i32
    %c0_i32_0 = arith.constant 0 : i32
    %c0_i32_1 = arith.constant 0 : i32
    return %c0_i32, %c0_i32_0 : i32, i32
  }
  func.func @transform_2(%arg0: i32) -> (i32, i32) {
    %c0_i32 = arith.constant 0 : i32
    %c0_i32_0 = arith.constant 0 : i32
    %c0_i32_1 = arith.constant 0 : i32
    return %c0_i32, %c0_i32_0 : i32, i32
  }
  func.func @transform_3(%arg0: i32) -> (i32, i32, i32) {
    %c0_i32 = arith.constant 0 : i32
    %c0_i32_0 = arith.constant 0 : i32
    %c0_i32_1 = arith.constant 0 : i32
    return %arg0, %c0_i32, %c0_i32_0 : i32, i32, i32
  }
}

</mosaic_0001>

<llo_original>
// kernel: tpu_custom_call.1
$region0: #{tpu_custom_call.1}
  #allocation0 [shape = 'u32[]', space=smem, size = 0x4, offset = 0x4, fixed_abs, tag = 'smem constant byte address 0x4 - core index']
  #allocation1 [shape = 'u32[72,128]{1,0:T(1,128)}', space=vmem, size = 0x9000, scoped, tag = 'internal scratch']
  %s0 = inlined_call_operand.hbm [shape: f32[8,16,16], index: 0, kind: input, shape index: {}]
  %s1 = inlined_call_operand.vmem [shape: f32[8,16], index: 1, kind: input, shape index: {}]
  %s2 = inlined_call_operand.vmem [shape: f32[16,8], index: 2, kind: input, shape index: {}]
  %s3 = inlined_call_operand.hbm [shape: f32[8,8,8], index: 3, kind: output, shape index: {}]
  %s4 = sld [smem:[#allocation0]]
  $region49: #{tpu_custom_call.1} parent=0
    _
  %s6 = ssub.s32 1, %s4
  %s7 = scalar_select 0, %s6, %s4
  $region1: #{tpu_custom_call.1} parent=0
    #allocation2 [shape = 'u8[65536]{0}', space=vmem, size = 0x10000, scoped, tag = 'input window, operand 0']
    #allocation3 [shape = 's32[2]{0}', space=sflag, size = 0x8, scoped, tag = 'scoped memory for tpu_custom_call.1']
    #allocation4 [shape = 's32[2]{0}', space=sflag, size = 0x8, scoped, tag = 'scoped memory for tpu_custom_call.1']
    #allocation5 [shape = 'u8[32768]{0}', space=vmem, size = 0x8000, scoped, tag = 'output window, operand 0']
    %8 = vsyncpa [#allocation3], 0
    %s9 = scalar_lea.sflag [#allocation3], 1
    %10 = vsyncpa %s9, 0
    %11 = vsyncpa [#allocation4], 0
    %s12 = scalar_lea.sflag [#allocation4], 1
    %13 = vsyncpa %s12, 0
    loop: start=0, step=1, limit=4
    $region2: #{tpu_custom_call.1} parent=1 // loop_pre_header
      _
    $region3: #{tpu_custom_call.1} parent=1 // loop_header
      %s15 = sphi 0, %s19
      %p16 = scmp.ge.s32.totalorder %s15, 4
      %s25 = sphi 0, %s27
      %s28 = sphi 0, %s25
      %s29 = sphi 0, %s28
      %s45 = sphi 0, %s29
      %s49 = sphi 0, %s49
      %s51 = sphi 0, %s49
      %s52 = sphi 0, %s51
      %s66 = sphi 0, %s52
      %s70 = sphi 0, %s70
      %s72 = sphi 0, %s70
      %s73 = sphi 0, %s72
      %s87 = sphi 0, %s73
      %s93 = sphi 0, %s95
      %s96 = sphi 0, %s93
      %s97 = sphi 0, %s96
      %s113 = sphi 0, %s97
    $region4: #{tpu_custom_call.1} parent=1 // loop_header_branch
      %18 = sbr.rel (%p16) target = $region8
    $region5: #{tpu_custom_call.1} parent=1 // loop_body
      %s20 = ssub.s32 %s15, 1
      %s21 = ssub.s32 %s15, 2
      %s22 = sadd.s32 %s15, 1
      %s23 = ssub.s32 %s15, %s22
      %p24 = scmp.eq.s32.totalorder %s23, 0
      %s26 = sadd.s32 %s25, 1
      %s27 = scalar_select %p24, %s25, %s26
      %p30 = pneg %p24
      %p31 = scmp.eq.s32.totalorder %s15, 1
      %p32 = por %p30, %p31
      %p33 = scmp.ne.s32.totalorder %s25, %s28
      %p34 = scmp.eq.s32.totalorder %s15, 0
      %p35 = por %p33, %p34
      %p36 = scmp.ne.s32.totalorder %s25, %s28
      %p37 = scmp.eq.s32.totalorder %s20, 1
      %p38 = por %p36, %p37
      %p39 = scmp.ne.s32.totalorder %s28, %s29
      %p40 = scmp.eq.s32.totalorder %s20, 0
      %p41 = por %p39, %p40
      %p42 = scmp.ne.s32.totalorder %s28, %s29
      %p43 = scmp.eq.s32.totalorder %s21, 1
      %p44 = por %p42, %p43
      %p46 = scmp.ne.s32.totalorder %s29, %s45
      %p47 = scmp.eq.s32.totalorder %s21, 0
      %p48 = por %p46, %p47
      %s50 = sadd.s32 %s49, 1
      %p53 = scmp.eq.s32.totalorder %s15, 1
      %p54 = scmp.ne.s32.totalorder %s49, %s51
      %p55 = scmp.eq.s32.totalorder %s15, 0
      %p56 = por %p54, %p55
      %p57 = scmp.ne.s32.totalorder %s49, %s51
      %p58 = scmp.eq.s32.totalorder %s20, 1
      %p59 = por %p57, %p58
      %p60 = scmp.ne.s32.totalorder %s51, %s52
      %p61 = scmp.eq.s32.totalorder %s20, 0
      %p62 = por %p60, %p61
      %p63 = scmp.ne.s32.totalorder %s51, %s52
      %p64 = scmp.eq.s32.totalorder %s21, 1
      %p65 = por %p63, %p64
      %p67 = scmp.ne.s32.totalorder %s52, %s66
      %p68 = scmp.eq.s32.totalorder %s21, 0
      %p69 = por %p67, %p68
      %s71 = sadd.s32 %s70, 1
      %p74 = scmp.eq.s32.totalorder %s15, 1
      %p75 = scmp.ne.s32.totalorder %s70, %s72
      %p76 = scmp.eq.s32.totalorder %s15, 0
      %p77 = por %p75, %p76
      %p78 = scmp.ne.s32.totalorder %s70, %s72
      %p79 = scmp.eq.s32.totalorder %s20, 1
      %p80 = por %p78, %p79
      %p81 = scmp.ne.s32.totalorder %s72, %s73
      %p82 = scmp.eq.s32.totalorder %s20, 0
      %p83 = por %p81, %p82
      %p84 = scmp.ne.s32.totalorder %s72, %s73
      %p85 = scmp.eq.s32.totalorder %s21, 1
      %p86 = por %p84, %p85
      %p88 = scmp.ne.s32.totalorder %s73, %s87
      %p89 = scmp.eq.s32.totalorder %s21, 0
      %p90 = por %p88, %p89
      %s91 = ssub.s32 %s15, %s22
      %p92 = scmp.eq.s32.totalorder %s91, 0
      %s94 = sadd.s32 %s93, 1
      %s95 = scalar_select %p92, %s93, %s94
      %p98 = pneg %p92
      %p99 = scmp.eq.s32.totalorder %s15, 1
      %p100 = por %p98, %p99
      %p101 = scmp.ne.s32.totalorder %s93, %s96
      %p102 = scmp.eq.s32.totalorder %s15, 0
      %p103 = por %p101, %p102
      %p104 = scmp.ne.s32.totalorder %s93, %s96
      %p105 = scmp.eq.s32.totalorder %s20, 1
      %p106 = por %p104, %p105
      %p107 = scmp.ne.s32.totalorder %s96, %s97
      %p108 = scmp.eq.s32.totalorder %s20, 0
      %p109 = por %p107, %p108
      %p110 = scmp.ne.s32.totalorder %s96, %s97
      %p111 = scmp.eq.s32.totalorder %s21, 1
      %p112 = por %p110, %p111
      %p114 = scmp.ne.s32.totalorder %s97, %s113
      %p115 = scmp.eq.s32.totalorder %s21, 0
      %p116 = por %p114, %p115
      %p117 = scmp.le.s32.totalorder 1, %s15
      %p118 = scmp.lt.s32.totalorder %s15, 3
      %p119 = pnand %p117, %p118
      %p120 = pneg %p119
      // Predicated region
      $region9: #{tpu_custom_call.1} parent=5 // pred_check
        _
      $region10: #{tpu_custom_call.1} parent=5 // pred_check_branch
        %122 = sbr.rel (%p119) target = $region12
      $region11: #{tpu_custom_call.1} parent=5 // pred_region
        %s123 = ssub.s32 %s15, 1
        // Predicated region
        $region13: #{tpu_custom_call.1} parent=11 // pred_check
          %p124 = pneg %p62
        $region14: #{tpu_custom_call.1} parent=11 // pred_check_branch
          %126 = sbr.rel (%p124) target = $region16
        $region15: #{tpu_custom_call.1} parent=11 // pred_region
          _
        $region16: #{tpu_custom_call.1} parent=11 // pred_fallthru
          _
        // Predicated region
        $region17: #{tpu_custom_call.1} parent=11 // pred_check
          %p127 = pneg %p83
        $region18: #{tpu_custom_call.1} parent=11 // pred_check_branch
          %129 = sbr.rel (%p127) target = $region20
        $region19: #{tpu_custom_call.1} parent=11 // pred_region
          _
        $region20: #{tpu_custom_call.1} parent=11 // pred_fallthru
          _
      $region12: #{tpu_custom_call.1} parent=5 // pred_fallthru
        _
      %p130 = scmp.lt.s32.totalorder %s15, 2
      // Predicated region
      $region21: #{tpu_custom_call.1} parent=5 // pred_check
        %p131 = pneg %p130
      $region22: #{tpu_custom_call.1} parent=5 // pred_check_branch
        %133 = sbr.rel (%p131) target = $region24
      $region23: #{tpu_custom_call.1} parent=5 // pred_region
        // Predicated region
        $region25: #{tpu_custom_call.1} parent=23 // pred_check
          %p134 = pneg %p35
        $region26: #{tpu_custom_call.1} parent=23 // pred_check_branch
          %136 = sbr.rel (%p134) target = $region28
        $region27: #{tpu_custom_call.1} parent=23 // pred_region
          %s137 = sand.u32 %s25, 1
          %s138 = scalar_lea.sflag [#allocation3], %s137
          %s139 = sand.u32 %s25, 1
          %s140 = smul.addr %s139, 64
          %s141 = scalar_lea.vmem [#allocation2], %s140
          %s142 = smul.u32 4, %s15
          %144 = vsyncadd %s138, 0
          %s145 = smul.addr %s142, 2
          %s146 = smul.addr %s145, 8
          %s147 = scalar_lea.hbm %s0, %s146
          %s148 = sshll.u32 %s147, 4
          %s149 = int_to_ptr.hbm [resolvable:$true] %s148
          %s150 = sshll.u32 %s141, 4
          %s151 = int_to_ptr.vmem [resolvable:$true] %s150
          %156 = dma.hbm_to_vmem [thread:$0]  %s149, 1024, %s151, %s138, 128, 128, 8
        $region28: #{tpu_custom_call.1} parent=23 // pred_fallthru
          _
      $region24: #{tpu_custom_call.1} parent=5 // pred_fallthru
        _
      %p157 = scmp.le.s32.totalorder 1, %s15
      %p158 = scmp.lt.s32.totalorder %s15, 3
      %p159 = pnand %p157, %p158
      %p160 = pneg %p159
      // Predicated region
      $region29: #{tpu_custom_call.1} parent=5 // pred_check
        _
      $region30: #{tpu_custom_call.1} parent=5 // pred_check_branch
        %162 = sbr.rel (%p159) target = $region32
      $region31: #{tpu_custom_call.1} parent=5 // pred_region
        %s163 = ssub.s32 %s15, 1
        %s164 = sand.u32 %s28, 1
        %s165 = scalar_lea.sflag [#allocation3], %s164
        %s166 = sand.u32 %s28, 1
        %s167 = smul.addr %s166, 64
        %s168 = scalar_lea.vmem [#allocation2], %s167
        // Predicated region
        $region33: #{tpu_custom_call.1} parent=31 // pred_check
          %p169 = pneg %p41
        $region34: #{tpu_custom_call.1} parent=31 // pred_check_branch
          %171 = sbr.rel (%p169) target = $region36
        $region35: #{tpu_custom_call.1} parent=31 // pred_region
          %173 = dma.done %s165, 1024
        $region36: #{tpu_custom_call.1} parent=31 // pred_fallthru
          _
        %s174 = sand.u32 %s28, 1
        %s175 = scalar_lea.sflag [#allocation3], %s174
        %s176 = sand.u32 %s28, 1
        %s177 = smul.addr %s176, 64
        %s178 = scalar_lea.vmem [#allocation2], %s177
        %p179 = pneg %p41
        %p180 = pneg %p38
        %p181 = pneg %p62
        %p182 = pneg %p59
        %p183 = pneg %p83
        %p184 = pneg %p80
        %p185 = pneg %p109
        %p186 = pneg %p106
        %s187 = sand.u32 %s96, 1
        %s188 = scalar_lea.sflag [#allocation4], %s187
        %s189 = sand.u32 %s96, 1
        %s190 = smul.addr %s189, 32
        %s191 = scalar_lea.vmem [#allocation5], %s190
        %s192 = smul.u32 4, %s20
        %s193 = smul.u32 4, %s20
        %v194 = vld [vmem:[%s1] sm:$0xff]
        %v195 = vld [vmem:[%s2] sm:$0xff]
        %v196 = vld [vmem:[%s2 + $0x8] sm:$0xff]
        %v197 = vld [vmem:[%s168] sm:$0xff]
        %v198 = vld [vmem:[%s168 + $0x8] sm:$0xff]
        %vm199 = vcmask 130048
        %v201 = vsel %vm199, %v194, 0
        %203 = vmatpush.msra.mxu0 0.0
        %204 = vmatpush.msra.mxu0 0.0
        %205 = vmatpush.msra.mxu0 0.0
        %206 = vmatpush.msra.mxu0 0.0
        %207 = vmatpush.msra.mxu0 0.0
        %208 = vmatpush.msra.mxu0 0.0
        %209 = vmatpush.msra.mxu0 0.0
        %210 = vmatpush.msra.mxu0 0.0
        %211 = vmatpush.msra.mxu0 0.0
        %212 = vmatpush.msra.mxu0 0.0
        %213 = vmatpush.msra.mxu0 0.0
        %214 = vmatpush.msra.mxu0 0.0
        %215 = vmatpush.msra.mxu0 0.0
        %216 = vmatpush.msra.mxu0 0.0
        %v217 = vand.u32 %v198, 4294901760
        %218 = vmatpush.msra.mxu0 %v217
        %v219 = vand.u32 %v197, 4294901760
        %220 = vmatpush.msra.mxu0 %v219
        %v221 = vand.u32 %v201, 4294901760
        %v222 = vsub.f32 %v201, %v221
        %v223 = vand.u32 %v222, 4294901760
        %v224 = vsub.f32 %v222, %v223
        %v225 = vand.u32 %v224, 4294901760
        %226 = vmatmul.f32.gmra.mxu0 %v225
        %v227 = vpop.f32.mrf.mxu0
        %v228 = vadd.f32 0.0, %v227
        %229 = vdwg.mxu0
        %230 = vmatpush.msra.mxu0 0.0
        %231 = vmatpush.msra.mxu0 0.0
        %232 = vmatpush.msra.mxu0 0.0
        %233 = vmatpush.msra.mxu0 0.0
        %234 = vmatpush.msra.mxu0 0.0
        %235 = vmatpush.msra.mxu0 0.0
        %236 = vmatpush.msra.mxu0 0.0
        %237 = vmatpush.msra.mxu0 0.0
        %238 = vmatpush.msra.mxu0 0.0
        %239 = vmatpush.msra.mxu0 0.0
        %240 = vmatpush.msra.mxu0 0.0
        %241 = vmatpush.msra.mxu0 0.0
        %242 = vmatpush.msra.mxu0 0.0
        %243 = vmatpush.msra.mxu0 0.0
        %v244 = vand.u32 %v198, 4294901760
        %v245 = vsub.f32 %v198, %v244
        %v246 = vand.u32 %v245, 4294901760
        %v247 = vsub.f32 %v245, %v246
        %v248 = vand.u32 %v247, 4294901760
        %249 = vmatpush.msra.mxu0 %v248
        %v250 = vand.u32 %v197, 4294901760
        %v251 = vsub.f32 %v197, %v250
        %v252 = vand.u32 %v251, 4294901760
        %v253 = vsub.f32 %v251, %v252
        %v254 = vand.u32 %v253, 4294901760
        %255 = vmatpush.msra.mxu0 %v254
        %v256 = vand.u32 %v201, 4294901760
        %257 = vmatmul.f32.gmra.mxu0 %v256
        %v258 = vpop.f32.mrf.mxu0
        %v259 = vadd.f32 %v228, %v258
        %260 = vdwg.mxu0
        %261 = vmatpush.msra.mxu0 0.0
        %262 = vmatpush.msra.mxu0 0.0
        %263 = vmatpush.msra.mxu0 0.0
        %264 = vmatpush.msra.mxu0 0.0
        %265 = vmatpush.msra.mxu0 0.0
        %266 = vmatpush.msra.mxu0 0.0
        %267 = vmatpush.msra.mxu0 0.0
        %268 = vmatpush.msra.mxu0 0.0
        %269 = vmatpush.msra.mxu0 0.0
        %270 = vmatpush.msra.mxu0 0.0
        %271 = vmatpush.msra.mxu0 0.0
        %272 = vmatpush.msra.mxu0 0.0
        %273 = vmatpush.msra.mxu0 0.0
        %274 = vmatpush.msra.mxu0 0.0
        %v275 = vand.u32 %v198, 4294901760
        %v276 = vsub.f32 %v198, %v275
        %277 = vmatpush.msra.mxu0 %v276
        %v278 = vand.u32 %v197, 4294901760
        %v279 = vsub.f32 %v197, %v278
        %280 = vmatpush.msra.mxu0 %v279
        %v281 = vand.u32 %v201, 4294901760
        %v282 = vsub.f32 %v201, %v281
        %283 = vmatmul.f32.gmra.mxu0 %v282
        %v284 = vpop.f32.mrf.mxu0
        %v285 = vadd.f32 %v259, %v284
        %286 = vdwg.mxu0
        %287 = vmatpush.msra.mxu0 0.0
        %288 = vmatpush.msra.mxu0 0.0
        %289 = vmatpush.msra.mxu0 0.0
        %290 = vmatpush.msra.mxu0 0.0
        %291 = vmatpush.msra.mxu0 0.0
        %292 = vmatpush.msra.mxu0 0.0
        %293 = vmatpush.msra.mxu0 0.0
        %294 = vmatpush.msra.mxu0 0.0
        %295 = vmatpush.msra.mxu0 0.0
        %296 = vmatpush.msra.mxu0 0.0
        %297 = vmatpush.msra.mxu0 0.0
        %298 = vmatpush.msra.mxu0 0.0
        %299 = vmatpush.msra.mxu0 0.0
        %300 = vmatpush.msra.mxu0 0.0
        %v301 = vand.u32 %v198, 4294901760
        %302 = vmatpush.msra.mxu0 %v301
        %v303 = vand.u32 %v197, 4294901760
        %304 = vmatpush.msra.mxu0 %v303
        %v305 = vand.u32 %v201, 4294901760
        %v306 = vsub.f32 %v201, %v305
        %v307 = vand.u32 %v306, 4294901760
        %308 = vmatmul.f32.gmra.mxu0 %v307
        %v309 = vpop.f32.mrf.mxu0
        %v310 = vadd.f32 %v285, %v309
        %311 = vdwg.mxu0
        %312 = vmatpush.msra.mxu0 0.0
        %313 = vmatpush.msra.mxu0 0.0
        %314 = vmatpush.msra.mxu0 0.0
        %315 = vmatpush.msra.mxu0 0.0
        %316 = vmatpush.msra.mxu0 0.0
        %317 = vmatpush.msra.mxu0 0.0
        %318 = vmatpush.msra.mxu0 0.0
        %319 = vmatpush.msra.mxu0 0.0
        %320 = vmatpush.msra.mxu0 0.0
        %321 = vmatpush.msra.mxu0 0.0
        %322 = vmatpush.msra.mxu0 0.0
        %323 = vmatpush.msra.mxu0 0.0
        %324 = vmatpush.msra.mxu0 0.0
        %325 = vmatpush.msra.mxu0 0.0
        %v326 = vand.u32 %v198, 4294901760
        %v327 = vsub.f32 %v198, %v326
        %v328 = vand.u32 %v327, 4294901760
        %329 = vmatpush.msra.mxu0 %v328
        %v330 = vand.u32 %v197, 4294901760
        %v331 = vsub.f32 %v197, %v330
        %v332 = vand.u32 %v331, 4294901760
        %333 = vmatpush.msra.mxu0 %v332
        %v334 = vand.u32 %v201, 4294901760
        %335 = vmatmul.f32.gmra.mxu0 %v334
        %v336 = vpop.f32.mrf.mxu0
        %v337 = vadd.f32 %v310, %v336
        %338 = vdwg.mxu0
        %339 = vmatpush.msra.mxu0 0.0
        %340 = vmatpush.msra.mxu0 0.0
        %341 = vmatpush.msra.mxu0 0.0
        %342 = vmatpush.msra.mxu0 0.0
        %343 = vmatpush.msra.mxu0 0.0
        %344 = vmatpush.msra.mxu0 0.0
        %345 = vmatpush.msra.mxu0 0.0
        %346 = vmatpush.msra.mxu0 0.0
        %347 = vmatpush.msra.mxu0 0.0
        %348 = vmatpush.msra.mxu0 0.0
        %349 = vmatpush.msra.mxu0 0.0
        %350 = vmatpush.msra.mxu0 0.0
        %351 = vmatpush.msra.mxu0 0.0
        %352 = vmatpush.msra.mxu0 0.0
        %v353 = vand.u32 %v198, 4294901760
        %354 = vmatpush.msra.mxu0 %v353
        %v355 = vand.u32 %v197, 4294901760
        %356 = vmatpush.msra.mxu0 %v355
        %v357 = vand.u32 %v201, 4294901760
        %358 = vmatmul.f32.gmra.mxu0 %v357
        %v359 = vpop.f32.mrf.mxu0
        %v360 = vadd.f32 %v337, %v359
        %361 = vdwg.mxu0
        %v363 = vsel %vm199, %v360, 0
        %365 = vmatpush.msra.mxu0 0.0
        %366 = vmatpush.msra.mxu0 0.0
        %367 = vmatpush.msra.mxu0 0.0
        %368 = vmatpush.msra.mxu0 0.0
        %369 = vmatpush.msra.mxu0 0.0
        %370 = vmatpush.msra.mxu0 0.0
        %371 = vmatpush.msra.mxu0 0.0
        %372 = vmatpush.msra.mxu0 0.0
        %373 = vmatpush.msra.mxu0 0.0
        %374 = vmatpush.msra.mxu0 0.0
        %375 = vmatpush.msra.mxu0 0.0
        %376 = vmatpush.msra.mxu0 0.0
        %377 = vmatpush.msra.mxu0 0.0
        %378 = vmatpush.msra.mxu0 0.0
        %v379 = vand.u32 %v196, 4294901760
        %380 = vmatpush.msra.mxu0 %v379
        %v381 = vand.u32 %v195, 4294901760
        %382 = vmatpush.msra.mxu0 %v381
        %v383 = vand.u32 %v363, 4294901760
        %v384 = vsub.f32 %v363, %v383
        %v385 = vand.u32 %v384, 4294901760
        %v386 = vsub.f32 %v384, %v385
        %v387 = vand.u32 %v386, 4294901760
        %388 = vmatmul.f32.gmra.mxu0 %v387
        %v389 = vpop.f32.mrf.mxu0
        %v390 = vadd.f32 0.0, %v389
        %391 = vdwg.mxu0
        %392 = vmatpush.msra.mxu0 0.0
        %393 = vmatpush.msra.mxu0 0.0
        %394 = vmatpush.msra.mxu0 0.0
        %395 = vmatpush.msra.mxu0 0.0
        %396 = vmatpush.msra.mxu0 0.0
        %397 = vmatpush.msra.mxu0 0.0
        %398 = vmatpush.msra.mxu0 0.0
        %399 = vmatpush.msra.mxu0 0.0
        %400 = vmatpush.msra.mxu0 0.0
        %401 = vmatpush.msra.mxu0 0.0
        %402 = vmatpush.msra.mxu0 0.0
        %403 = vmatpush.msra.mxu0 0.0
        %404 = vmatpush.msra.mxu0 0.0
        %405 = vmatpush.msra.mxu0 0.0
        %v406 = vand.u32 %v196, 4294901760
        %v407 = vsub.f32 %v196, %v406
        %v408 = vand.u32 %v407, 4294901760
        %v409 = vsub.f32 %v407, %v408
        %v410 = vand.u32 %v409, 4294901760
        %411 = vmatpush.msra.mxu0 %v410
        %v412 = vand.u32 %v195, 4294901760
        %v413 = vsub.f32 %v195, %v412
        %v414 = vand.u32 %v413, 4294901760
        %v415 = vsub.f32 %v413, %v414
        %v416 = vand.u32 %v415, 4294901760
        %417 = vmatpush.msra.mxu0 %v416
        %v418 = vand.u32 %v363, 4294901760
        %419 = vmatmul.f32.gmra.mxu0 %v418
        %v420 = vpop.f32.mrf.mxu0
        %v421 = vadd.f32 %v390, %v420
        %422 = vdwg.mxu0
        %423 = vmatpush.msra.mxu0 0.0
        %424 = vmatpush.msra.mxu0 0.0
        %425 = vmatpush.msra.mxu0 0.0
        %426 = vmatpush.msra.mxu0 0.0
        %427 = vmatpush.msra.mxu0 0.0
        %428 = vmatpush.msra.mxu0 0.0
        %429 = vmatpush.msra.mxu0 0.0
        %430 = vmatpush.msra.mxu0 0.0
        %431 = vmatpush.msra.mxu0 0.0
        %432 = vmatpush.msra.mxu0 0.0
        %433 = vmatpush.msra.mxu0 0.0
        %434 = vmatpush.msra.mxu0 0.0
        %435 = vmatpush.msra.mxu0 0.0
        %436 = vmatpush.msra.mxu0 0.0
        %v437 = vand.u32 %v196, 4294901760
        %v438 = vsub.f32 %v196, %v437
        %439 = vmatpush.msra.mxu0 %v438
        %v440 = vand.u32 %v195, 4294901760
        %v441 = vsub.f32 %v195, %v440
        %442 = vmatpush.msra.mxu0 %v441
        %v443 = vand.u32 %v363, 4294901760
        %v444 = vsub.f32 %v363, %v443
        %445 = vmatmul.f32.gmra.mxu0 %v444
        %v446 = vpop.f32.mrf.mxu0
        %v447 = vadd.f32 %v421, %v446
        %448 = vdwg.mxu0
        %449 = vmatpush.msra.mxu0 0.0
        %450 = vmatpush.msra.mxu0 0.0
        %451 = vmatpush.msra.mxu0 0.0
        %452 = vmatpush.msra.mxu0 0.0
        %453 = vmatpush.msra.mxu0 0.0
        %454 = vmatpush.msra.mxu0 0.0
        %455 = vmatpush.msra.mxu0 0.0
        %456 = vmatpush.msra.mxu0 0.0
        %457 = vmatpush.msra.mxu0 0.0
        %458 = vmatpush.msra.mxu0 0.0
        %459 = vmatpush.msra.mxu0 0.0
        %460 = vmatpush.msra.mxu0 0.0
        %461 = vmatpush.msra.mxu0 0.0
        %462 = vmatpush.msra.mxu0 0.0
        %v463 = vand.u32 %v196, 4294901760
        %464 = vmatpush.msra.mxu0 %v463
        %v465 = vand.u32 %v195, 4294901760
        %466 = vmatpush.msra.mxu0 %v465
        %v467 = vand.u32 %v363, 4294901760
        %v468 = vsub.f32 %v363, %v467
        %v469 = vand.u32 %v468, 4294901760
        %470 = vmatmul.f32.gmra.mxu0 %v469
        %v471 = vpop.f32.mrf.mxu0
        %v472 = vadd.f32 %v447, %v471
        %473 = vdwg.mxu0
        %474 = vmatpush.msra.mxu0 0.0
        %475 = vmatpush.msra.mxu0 0.0
        %476 = vmatpush.msra.mxu0 0.0
        %477 = vmatpush.msra.mxu0 0.0
        %478 = vmatpush.msra.mxu0 0.0
        %479 = vmatpush.msra.mxu0 0.0
        %480 = vmatpush.msra.mxu0 0.0
        %481 = vmatpush.msra.mxu0 0.0
        %482 = vmatpush.msra.mxu0 0.0
        %483 = vmatpush.msra.mxu0 0.0
        %484 = vmatpush.msra.mxu0 0.0
        %485 = vmatpush.msra.mxu0 0.0
        %486 = vmatpush.msra.mxu0 0.0
        %487 = vmatpush.msra.mxu0 0.0
        %v488 = vand.u32 %v196, 4294901760
        %v489 = vsub.f32 %v196, %v488
        %v490 = vand.u32 %v489, 4294901760
        %491 = vmatpush.msra.mxu0 %v490
        %v492 = vand.u32 %v195, 4294901760
        %v493 = vsub.f32 %v195, %v492
        %v494 = vand.u32 %v493, 4294901760
        %495 = vmatpush.msra.mxu0 %v494
        %v496 = vand.u32 %v363, 4294901760
        %497 = vmatmul.f32.gmra.mxu0 %v496
        %v498 = vpop.f32.mrf.mxu0
        %v499 = vadd.f32 %v472, %v498
        %500 = vdwg.mxu0
        %501 = vmatpush.msra.mxu0 0.0
        %502 = vmatpush.msra.mxu0 0.0
        %503 = vmatpush.msra.mxu0 0.0
        %504 = vmatpush.msra.mxu0 0.0
        %505 = vmatpush.msra.mxu0 0.0
        %506 = vmatpush.msra.mxu0 0.0
        %507 = vmatpush.msra.mxu0 0.0
        %508 = vmatpush.msra.mxu0 0.0
        %509 = vmatpush.msra.mxu0 0.0
        %510 = vmatpush.msra.mxu0 0.0
        %511 = vmatpush.msra.mxu0 0.0
        %512 = vmatpush.msra.mxu0 0.0
        %513 = vmatpush.msra.mxu0 0.0
        %514 = vmatpush.msra.mxu0 0.0
        %v515 = vand.u32 %v196, 4294901760
        %516 = vmatpush.msra.mxu0 %v515
        %v517 = vand.u32 %v195, 4294901760
        %518 = vmatpush.msra.mxu0 %v517
        %v519 = vand.u32 %v363, 4294901760
        %520 = vmatmul.f32.gmra.mxu0 %v519
        %v521 = vpop.f32.mrf.mxu0
        %v522 = vadd.f32 %v499, %v521
        %523 = vdwg.mxu0
        %vm524 = vcmask 64512
        %525 = vst.msk [vmem:[%s191] sm:$0xff] %vm524, %v522
        %s526 = scalar_lea.vmem %s168, 16 [#allocation2]
        %v527 = vld [vmem:[%s526] sm:$0xff]
        %v528 = vld [vmem:[%s526 + $0x8] sm:$0xff]
        %529 = vmatpush.msra.mxu0 0.0
        %530 = vmatpush.msra.mxu0 0.0
        %531 = vmatpush.msra.mxu0 0.0
        %532 = vmatpush.msra.mxu0 0.0
        %533 = vmatpush.msra.mxu0 0.0
        %534 = vmatpush.msra.mxu0 0.0
        %535 = vmatpush.msra.mxu0 0.0
        %536 = vmatpush.msra.mxu0 0.0
        %537 = vmatpush.msra.mxu0 0.0
        %538 = vmatpush.msra.mxu0 0.0
        %539 = vmatpush.msra.mxu0 0.0
        %540 = vmatpush.msra.mxu0 0.0
        %541 = vmatpush.msra.mxu0 0.0
        %542 = vmatpush.msra.mxu0 0.0
        %v543 = vand.u32 %v528, 4294901760
        %544 = vmatpush.msra.mxu0 %v543
        %v545 = vand.u32 %v527, 4294901760
        %546 = vmatpush.msra.mxu0 %v545
        %v547 = vand.u32 %v201, 4294901760
        %v548 = vsub.f32 %v201, %v547
        %v549 = vand.u32 %v548, 4294901760
        %v550 = vsub.f32 %v548, %v549
        %v551 = vand.u32 %v550, 4294901760
        %552 = vmatmul.f32.gmra.mxu0 %v551
        %v553 = vpop.f32.mrf.mxu0
        %v554 = vadd.f32 0.0, %v553
        %555 = vdwg.mxu0
        %556 = vmatpush.msra.mxu0 0.0
        %557 = vmatpush.msra.mxu0 0.0
        %558 = vmatpush.msra.mxu0 0.0
        %559 = vmatpush.msra.mxu0 0.0
        %560 = vmatpush.msra.mxu0 0.0
        %561 = vmatpush.msra.mxu0 0.0
        %562 = vmatpush.msra.mxu0 0.0
        %563 = vmatpush.msra.mxu0 0.0
        %564 = vmatpush.msra.mxu0 0.0
        %565 = vmatpush.msra.mxu0 0.0
        %566 = vmatpush.msra.mxu0 0.0
        %567 = vmatpush.msra.mxu0 0.0
        %568 = vmatpush.msra.mxu0 0.0
        %569 = vmatpush.msra.mxu0 0.0
        %v570 = vand.u32 %v528, 4294901760
        %v571 = vsub.f32 %v528, %v570
        %v572 = vand.u32 %v571, 4294901760
        %v573 = vsub.f32 %v571, %v572
        %v574 = vand.u32 %v573, 4294901760
        %575 = vmatpush.msra.mxu0 %v574
        %v576 = vand.u32 %v527, 4294901760
        %v577 = vsub.f32 %v527, %v576
        %v578 = vand.u32 %v577, 4294901760
        %v579 = vsub.f32 %v577, %v578
        %v580 = vand.u32 %v579, 4294901760
        %581 = vmatpush.msra.mxu0 %v580
        %v582 = vand.u32 %v201, 4294901760
        %583 = vmatmul.f32.gmra.mxu0 %v582
        %v584 = vpop.f32.mrf.mxu0
        %v585 = vadd.f32 %v554, %v584
        %586 = vdwg.mxu0
        %587 = vmatpush.msra.mxu0 0.0
        %588 = vmatpush.msra.mxu0 0.0
        %589 = vmatpush.msra.mxu0 0.0
        %590 = vmatpush.msra.mxu0 0.0
        %591 = vmatpush.msra.mxu0 0.0
        %592 = vmatpush.msra.mxu0 0.0
        %593 = vmatpush.msra.mxu0 0.0
        %594 = vmatpush.msra.mxu0 0.0
        %595 = vmatpush.msra.mxu0 0.0
        %596 = vmatpush.msra.mxu0 0.0
        %597 = vmatpush.msra.mxu0 0.0
        %598 = vmatpush.msra.mxu0 0.0
        %599 = vmatpush.msra.mxu0 0.0
        %600 = vmatpush.msra.mxu0 0.0
        %v601 = vand.u32 %v528, 4294901760
        %v602 = vsub.f32 %v528, %v601
        %603 = vmatpush.msra.mxu0 %v602
        %v604 = vand.u32 %v527, 4294901760
        %v605 = vsub.f32 %v527, %v604
        %606 = vmatpush.msra.mxu0 %v605
        %v607 = vand.u32 %v201, 4294901760
        %v608 = vsub.f32 %v201, %v607
        %609 = vmatmul.f32.gmra.mxu0 %v608
        %v610 = vpop.f32.mrf.mxu0
        %v611 = vadd.f32 %v585, %v610
        %612 = vdwg.mxu0
        %613 = vmatpush.msra.mxu0 0.0
        %614 = vmatpush.msra.mxu0 0.0
        %615 = vmatpush.msra.mxu0 0.0
        %616 = vmatpush.msra.mxu0 0.0
        %617 = vmatpush.msra.mxu0 0.0
        %618 = vmatpush.msra.mxu0 0.0
        %619 = vmatpush.msra.mxu0 0.0
        %620 = vmatpush.msra.mxu0 0.0
        %621 = vmatpush.msra.mxu0 0.0
        %622 = vmatpush.msra.mxu0 0.0
        %623 = vmatpush.msra.mxu0 0.0
        %624 = vmatpush.msra.mxu0 0.0
        %625 = vmatpush.msra.mxu0 0.0
        %626 = vmatpush.msra.mxu0 0.0
        %v627 = vand.u32 %v528, 4294901760
        %628 = vmatpush.msra.mxu0 %v627
        %v629 = vand.u32 %v527, 4294901760
        %630 = vmatpush.msra.mxu0 %v629
        %v631 = vand.u32 %v201, 4294901760
        %v632 = vsub.f32 %v201, %v631
        %v633 = vand.u32 %v632, 4294901760
        %634 = vmatmul.f32.gmra.mxu0 %v633
        %v635 = vpop.f32.mrf.mxu0
        %v636 = vadd.f32 %v611, %v635
        %637 = vdwg.mxu0
        %638 = vmatpush.msra.mxu0 0.0
        %639 = vmatpush.msra.mxu0 0.0
        %640 = vmatpush.msra.mxu0 0.0
        %641 = vmatpush.msra.mxu0 0.0
        %642 = vmatpush.msra.mxu0 0.0
        %643 = vmatpush.msra.mxu0 0.0
        %644 = vmatpush.msra.mxu0 0.0
        %645 = vmatpush.msra.mxu0 0.0
        %646 = vmatpush.msra.mxu0 0.0
        %647 = vmatpush.msra.mxu0 0.0
        %648 = vmatpush.msra.mxu0 0.0
        %649 = vmatpush.msra.mxu0 0.0
        %650 = vmatpush.msra.mxu0 0.0
        %651 = vmatpush.msra.mxu0 0.0
        %v652 = vand.u32 %v528, 4294901760
        %v653 = vsub.f32 %v528, %v652
        %v654 = vand.u32 %v653, 4294901760
        %655 = vmatpush.msra.mxu0 %v654
        %v656 = vand.u32 %v527, 4294901760
        %v657 = vsub.f32 %v527, %v656
        %v658 = vand.u32 %v657, 4294901760
        %659 = vmatpush.msra.mxu0 %v658
        %v660 = vand.u32 %v201, 4294901760
        %661 = vmatmul.f32.gmra.mxu0 %v660
        %v662 = vpop.f32.mrf.mxu0
        %v663 = vadd.f32 %v636, %v662
        %664 = vdwg.mxu0
        %665 = vmatpush.msra.mxu0 0.0
        %666 = vmatpush.msra.mxu0 0.0
        %667 = vmatpush.msra.mxu0 0.0
        %668 = vmatpush.msra.mxu0 0.0
        %669 = vmatpush.msra.mxu0 0.0
        %670 = vmatpush.msra.mxu0 0.0
        %671 = vmatpush.msra.mxu0 0.0
        %672 = vmatpush.msra.mxu0 0.0
        %673 = vmatpush.msra.mxu0 0.0
        %674 = vmatpush.msra.mxu0 0.0
        %675 = vmatpush.msra.mxu0 0.0
        %676 = vmatpush.msra.mxu0 0.0
        %677 = vmatpush.msra.mxu0 0.0
        %678 = vmatpush.msra.mxu0 0.0
        %v679 = vand.u32 %v528, 4294901760
        %680 = vmatpush.msra.mxu0 %v679
        %v681 = vand.u32 %v527, 4294901760
        %682 = vmatpush.msra.mxu0 %v681
        %v683 = vand.u32 %v201, 4294901760
        %684 = vmatmul.f32.gmra.mxu0 %v683
        %v685 = vpop.f32.mrf.mxu0
        %v686 = vadd.f32 %v663, %v685
        %687 = vdwg.mxu0
        %v689 = vsel %vm199, %v686, 0
        %691 = vmatpush.msra.mxu0 0.0
        %692 = vmatpush.msra.mxu0 0.0
        %693 = vmatpush.msra.mxu0 0.0
        %694 = vmatpush.msra.mxu0 0.0
        %695 = vmatpush.msra.mxu0 0.0
        %696 = vmatpush.msra.mxu0 0.0
        %697 = vmatpush.msra.mxu0 0.0
        %698 = vmatpush.msra.mxu0 0.0
        %699 = vmatpush.msra.mxu0 0.0
        %700 = vmatpush.msra.mxu0 0.0
        %701 = vmatpush.msra.mxu0 0.0
        %702 = vmatpush.msra.mxu0 0.0
        %703 = vmatpush.msra.mxu0 0.0
        %704 = vmatpush.msra.mxu0 0.0
        %v705 = vand.u32 %v196, 4294901760
        %706 = vmatpush.msra.mxu0 %v705
        %v707 = vand.u32 %v195, 4294901760
        %708 = vmatpush.msra.mxu0 %v707
        %v709 = vand.u32 %v689, 4294901760
        %v710 = vsub.f32 %v689, %v709
        %v711 = vand.u32 %v710, 4294901760
        %v712 = vsub.f32 %v710, %v711
        %v713 = vand.u32 %v712, 4294901760
        %714 = vmatmul.f32.gmra.mxu0 %v713
        %v715 = vpop.f32.mrf.mxu0
        %v716 = vadd.f32 0.0, %v715
        %717 = vdwg.mxu0
        %718 = vmatpush.msra.mxu0 0.0
        %719 = vmatpush.msra.mxu0 0.0
        %720 = vmatpush.msra.mxu0 0.0
        %721 = vmatpush.msra.mxu0 0.0
        %722 = vmatpush.msra.mxu0 0.0
        %723 = vmatpush.msra.mxu0 0.0
        %724 = vmatpush.msra.mxu0 0.0
        %725 = vmatpush.msra.mxu0 0.0
        %726 = vmatpush.msra.mxu0 0.0
        %727 = vmatpush.msra.mxu0 0.0
        %728 = vmatpush.msra.mxu0 0.0
        %729 = vmatpush.msra.mxu0 0.0
        %730 = vmatpush.msra.mxu0 0.0
        %731 = vmatpush.msra.mxu0 0.0
        %v732 = vand.u32 %v196, 4294901760
        %v733 = vsub.f32 %v196, %v732
        %v734 = vand.u32 %v733, 4294901760
        %v735 = vsub.f32 %v733, %v734
        %v736 = vand.u32 %v735, 4294901760
        %737 = vmatpush.msra.mxu0 %v736
        %v738 = vand.u32 %v195, 4294901760
        %v739 = vsub.f32 %v195, %v738
        %v740 = vand.u32 %v739, 4294901760
        %v741 = vsub.f32 %v739, %v740
        %v742 = vand.u32 %v741, 4294901760
        %743 = vmatpush.msra.mxu0 %v742
        %v744 = vand.u32 %v689, 4294901760
        %745 = vmatmul.f32.gmra.mxu0 %v744
        %v746 = vpop.f32.mrf.mxu0
        %v747 = vadd.f32 %v716, %v746
        %748 = vdwg.mxu0
        %749 = vmatpush.msra.mxu0 0.0
        %750 = vmatpush.msra.mxu0 0.0
        %751 = vmatpush.msra.mxu0 0.0
        %752 = vmatpush.msra.mxu0 0.0
        %753 = vmatpush.msra.mxu0 0.0
        %754 = vmatpush.msra.mxu0 0.0
        %755 = vmatpush.msra.mxu0 0.0
        %756 = vmatpush.msra.mxu0 0.0
        %757 = vmatpush.msra.mxu0 0.0
        %758 = vmatpush.msra.mxu0 0.0
        %759 = vmatpush.msra.mxu0 0.0
        %760 = vmatpush.msra.mxu0 0.0
        %761 = vmatpush.msra.mxu0 0.0
        %762 = vmatpush.msra.mxu0 0.0
        %v763 = vand.u32 %v196, 4294901760
        %v764 = vsub.f32 %v196, %v763
        %765 = vmatpush.msra.mxu0 %v764
        %v766 = vand.u32 %v195, 4294901760
        %v767 = vsub.f32 %v195, %v766
        %768 = vmatpush.msra.mxu0 %v767
        %v769 = vand.u32 %v689, 4294901760
        %v770 = vsub.f32 %v689, %v769
        %771 = vmatmul.f32.gmra.mxu0 %v770
        %v772 = vpop.f32.mrf.mxu0
        %v773 = vadd.f32 %v747, %v772
        %774 = vdwg.mxu0
        %775 = vmatpush.msra.mxu0 0.0
        %776 = vmatpush.msra.mxu0 0.0
        %777 = vmatpush.msra.mxu0 0.0
        %778 = vmatpush.msra.mxu0 0.0
        %779 = vmatpush.msra.mxu0 0.0
        %780 = vmatpush.msra.mxu0 0.0
        %781 = vmatpush.msra.mxu0 0.0
        %782 = vmatpush.msra.mxu0 0.0
        %783 = vmatpush.msra.mxu0 0.0
        %784 = vmatpush.msra.mxu0 0.0
        %785 = vmatpush.msra.mxu0 0.0
        %786 = vmatpush.msra.mxu0 0.0
        %787 = vmatpush.msra.mxu0 0.0
        %788 = vmatpush.msra.mxu0 0.0
        %v789 = vand.u32 %v196, 4294901760
        %790 = vmatpush.msra.mxu0 %v789
        %v791 = vand.u32 %v195, 4294901760
        %792 = vmatpush.msra.mxu0 %v791
        %v793 = vand.u32 %v689, 4294901760
        %v794 = vsub.f32 %v689, %v793
        %v795 = vand.u32 %v794, 4294901760
        %796 = vmatmul.f32.gmra.mxu0 %v795
        %v797 = vpop.f32.mrf.mxu0
        %v798 = vadd.f32 %v773, %v797
        %799 = vdwg.mxu0
        %800 = vmatpush.msra.mxu0 0.0
        %801 = vmatpush.msra.mxu0 0.0
        %802 = vmatpush.msra.mxu0 0.0
        %803 = vmatpush.msra.mxu0 0.0
        %804 = vmatpush.msra.mxu0 0.0
        %805 = vmatpush.msra.mxu0 0.0
        %806 = vmatpush.msra.mxu0 0.0
        %807 = vmatpush.msra.mxu0 0.0
        %808 = vmatpush.msra.mxu0 0.0
        %809 = vmatpush.msra.mxu0 0.0
        %810 = vmatpush.msra.mxu0 0.0
        %811 = vmatpush.msra.mxu0 0.0
        %812 = vmatpush.msra.mxu0 0.0
        %813 = vmatpush.msra.mxu0 0.0
        %v814 = vand.u32 %v196, 4294901760
        %v815 = vsub.f32 %v196, %v814
        %v816 = vand.u32 %v815, 4294901760
        %817 = vmatpush.msra.mxu0 %v816
        %v818 = vand.u32 %v195, 4294901760
        %v819 = vsub.f32 %v195, %v818
        %v820 = vand.u32 %v819, 4294901760
        %821 = vmatpush.msra.mxu0 %v820
        %v822 = vand.u32 %v689, 4294901760
        %823 = vmatmul.f32.gmra.mxu0 %v822
        %v824 = vpop.f32.mrf.mxu0
        %v825 = vadd.f32 %v798, %v824
        %826 = vdwg.mxu0
        %827 = vmatpush.msra.mxu0 0.0
        %828 = vmatpush.msra.mxu0 0.0
        %829 = vmatpush.msra.mxu0 0.0
        %830 = vmatpush.msra.mxu0 0.0
        %831 = vmatpush.msra.mxu0 0.0
        %832 = vmatpush.msra.mxu0 0.0
        %833 = vmatpush.msra.mxu0 0.0
        %834 = vmatpush.msra.mxu0 0.0
        %835 = vmatpush.msra.mxu0 0.0
        %836 = vmatpush.msra.mxu0 0.0
        %837 = vmatpush.msra.mxu0 0.0
        %838 = vmatpush.msra.mxu0 0.0
        %839 = vmatpush.msra.mxu0 0.0
        %840 = vmatpush.msra.mxu0 0.0
        %v841 = vand.u32 %v196, 4294901760
        %842 = vmatpush.msra.mxu0 %v841
        %v843 = vand.u32 %v195, 4294901760
        %844 = vmatpush.msra.mxu0 %v843
        %v845 = vand.u32 %v689, 4294901760
        %846 = vmatmul.f32.gmra.mxu0 %v845
        %v847 = vpop.f32.mrf.mxu0
        %v848 = vadd.f32 %v825, %v847
        %849 = vdwg.mxu0
        %s850 = scalar_lea.vmem %s191, 8 [#allocation5]
        %851 = vst.msk [vmem:[%s850] sm:$0xff] %vm524, %v848
        %s852 = scalar_lea.vmem %s168, 32 [#allocation2]
        %v853 = vld [vmem:[%s852] sm:$0xff]
        %v854 = vld [vmem:[%s852 + $0x8] sm:$0xff]
        %855 = vmatpush.msra.mxu0 0.0
        %856 = vmatpush.msra.mxu0 0.0
        %857 = vmatpush.msra.mxu0 0.0
        %858 = vmatpush.msra.mxu0 0.0
        %859 = vmatpush.msra.mxu0 0.0
        %860 = vmatpush.msra.mxu0 0.0
        %861 = vmatpush.msra.mxu0 0.0
        %862 = vmatpush.msra.mxu0 0.0
        %863 = vmatpush.msra.mxu0 0.0
        %864 = vmatpush.msra.mxu0 0.0
        %865 = vmatpush.msra.mxu0 0.0
        %866 = vmatpush.msra.mxu0 0.0
        %867 = vmatpush.msra.mxu0 0.0
        %868 = vmatpush.msra.mxu0 0.0
        %v869 = vand.u32 %v854, 4294901760
        %870 = vmatpush.msra.mxu0 %v869
        %v871 = vand.u32 %v853, 4294901760
        %872 = vmatpush.msra.mxu0 %v871
        %v873 = vand.u32 %v201, 4294901760
        %v874 = vsub.f32 %v201, %v873
        %v875 = vand.u32 %v874, 4294901760
        %v876 = vsub.f32 %v874, %v875
        %v877 = vand.u32 %v876, 4294901760
        %878 = vmatmul.f32.gmra.mxu0 %v877
        %v879 = vpop.f32.mrf.mxu0
        %v880 = vadd.f32 0.0, %v879
        %881 = vdwg.mxu0
        %882 = vmatpush.msra.mxu0 0.0
        %883 = vmatpush.msra.mxu0 0.0
        %884 = vmatpush.msra.mxu0 0.0
        %885 = vmatpush.msra.mxu0 0.0
        %886 = vmatpush.msra.mxu0 0.0
        %887 = vmatpush.msra.mxu0 0.0
        %888 = vmatpush.msra.mxu0 0.0
        %889 = vmatpush.msra.mxu0 0.0
        %890 = vmatpush.msra.mxu0 0.0
        %891 = vmatpush.msra.mxu0 0.0
        %892 = vmatpush.msra.mxu0 0.0
        %893 = vmatpush.msra.mxu0 0.0
        %894 = vmatpush.msra.mxu0 0.0
        %895 = vmatpush.msra.mxu0 0.0
        %v896 = vand.u32 %v854, 4294901760
        %v897 = vsub.f32 %v854, %v896
        %v898 = vand.u32 %v897, 4294901760
        %v899 = vsub.f32 %v897, %v898
        %v900 = vand.u32 %v899, 4294901760
        %901 = vmatpush.msra.mxu0 %v900
        %v902 = vand.u32 %v853, 4294901760
        %v903 = vsub.f32 %v853, %v902
        %v904 = vand.u32 %v903, 4294901760
        %v905 = vsub.f32 %v903, %v904
        %v906 = vand.u32 %v905, 4294901760
        %907 = vmatpush.msra.mxu0 %v906
        %v908 = vand.u32 %v201, 4294901760
        %909 = vmatmul.f32.gmra.mxu0 %v908
        %v910 = vpop.f32.mrf.mxu0
        %v911 = vadd.f32 %v880, %v910
        %912 = vdwg.mxu0
        %913 = vmatpush.msra.mxu0 0.0
        %914 = vmatpush.msra.mxu0 0.0
        %915 = vmatpush.msra.mxu0 0.0
        %916 = vmatpush.msra.mxu0 0.0
        %917 = vmatpush.msra.mxu0 0.0
        %918 = vmatpush.msra.mxu0 0.0
        %919 = vmatpush.msra.mxu0 0.0
        %920 = vmatpush.msra.mxu0 0.0
        %921 = vmatpush.msra.mxu0 0.0
        %922 = vmatpush.msra.mxu0 0.0
        %923 = vmatpush.msra.mxu0 0.0
        %924 = vmatpush.msra.mxu0 0.0
        %925 = vmatpush.msra.mxu0 0.0
        %926 = vmatpush.msra.mxu0 0.0
        %v927 = vand.u32 %v854, 4294901760
        %v928 = vsub.f32 %v854, %v927
        %929 = vmatpush.msra.mxu0 %v928
        %v930 = vand.u32 %v853, 4294901760
        %v931 = vsub.f32 %v853, %v930
        %932 = vmatpush.msra.mxu0 %v931
        %v933 = vand.u32 %v201, 4294901760
        %v934 = vsub.f32 %v201, %v933
        %935 = vmatmul.f32.gmra.mxu0 %v934
        %v936 = vpop.f32.mrf.mxu0
        %v937 = vadd.f32 %v911, %v936
        %938 = vdwg.mxu0
        %939 = vmatpush.msra.mxu0 0.0
        %940 = vmatpush.msra.mxu0 0.0
        %941 = vmatpush.msra.mxu0 0.0
        %942 = vmatpush.msra.mxu0 0.0
        %943 = vmatpush.msra.mxu0 0.0
        %944 = vmatpush.msra.mxu0 0.0
        %945 = vmatpush.msra.mxu0 0.0
        %946 = vmatpush.msra.mxu0 0.0
        %947 = vmatpush.msra.mxu0 0.0
        %948 = vmatpush.msra.mxu0 0.0
        %949 = vmatpush.msra.mxu0 0.0
        %950 = vmatpush.msra.mxu0 0.0
        %951 = vmatpush.msra.mxu0 0.0
        %952 = vmatpush.msra.mxu0 0.0
        %v953 = vand.u32 %v854, 4294901760
        %954 = vmatpush.msra.mxu0 %v953
        %v955 = vand.u32 %v853, 4294901760
        %956 = vmatpush.msra.mxu0 %v955
        %v957 = vand.u32 %v201, 4294901760
        %v958 = vsub.f32 %v201, %v957
        %v959 = vand.u32 %v958, 4294901760
        %960 = vmatmul.f32.gmra.mxu0 %v959
        %v961 = vpop.f32.mrf.mxu0
        %v962 = vadd.f32 %v937, %v961
        %963 = vdwg.mxu0
        %964 = vmatpush.msra.mxu0 0.0
        %965 = vmatpush.msra.mxu0 0.0
        %966 = vmatpush.msra.mxu0 0.0
        %967 = vmatpush.msra.mxu0 0.0
        %968 = vmatpush.msra.mxu0 0.0
        %969 = vmatpush.msra.mxu0 0.0
        %970 = vmatpush.msra.mxu0 0.0
        %971 = vmatpush.msra.mxu0 0.0
        %972 = vmatpush.msra.mxu0 0.0
        %973 = vmatpush.msra.mxu0 0.0
        %974 = vmatpush.msra.mxu0 0.0
        %975 = vmatpush.msra.mxu0 0.0
        %976 = vmatpush.msra.mxu0 0.0
        %977 = vmatpush.msra.mxu0 0.0
        %v978 = vand.u32 %v854, 4294901760
        %v979 = vsub.f32 %v854, %v978
        %v980 = vand.u32 %v979, 4294901760
        %981 = vmatpush.msra.mxu0 %v980
        %v982 = vand.u32 %v853, 4294901760
        %v983 = vsub.f32 %v853, %v982
        %v984 = vand.u32 %v983, 4294901760
        %985 = vmatpush.msra.mxu0 %v984
        %v986 = vand.u32 %v201, 4294901760
        %987 = vmatmul.f32.gmra.mxu0 %v986
        %v988 = vpop.f32.mrf.mxu0
        %v989 = vadd.f32 %v962, %v988
        %990 = vdwg.mxu0
        %991 = vmatpush.msra.mxu0 0.0
        %992 = vmatpush.msra.mxu0 0.0
        %993 = vmatpush.msra.mxu0 0.0
        %994 = vmatpush.msra.mxu0 0.0
        %995 = vmatpush.msra.mxu0 0.0
        %996 = vmatpush.msra.mxu0 0.0
        %997 = vmatpush.msra.mxu0 0.0
        %998 = vmatpush.msra.mxu0 0.0
        %999 = vmatpush.msra.mxu0 0.0
        %1000 = vmatpush.msra.mxu0 0.0
        %1001 = vmatpush.msra.mxu0 0.0
        %1002 = vmatpush.msra.mxu0 0.0
        %1003 = vmatpush.msra.mxu0 0.0
        %1004 = vmatpush.msra.mxu0 0.0
        %v1005 = vand.u32 %v854, 4294901760
        %1006 = vmatpush.msra.mxu0 %v1005
        %v1007 = vand.u32 %v853, 4294901760
        %1008 = vmatpush.msra.mxu0 %v1007
        %v1009 = vand.u32 %v201, 4294901760
        %1010 = vmatmul.f32.gmra.mxu0 %v1009
        %v1011 = vpop.f32.mrf.mxu0
        %v1012 = vadd.f32 %v989, %v1011
        %1013 = vdwg.mxu0
        %v1015 = vsel %vm199, %v1012, 0
        %1017 = vmatpush.msra.mxu0 0.0
        %1018 = vmatpush.msra.mxu0 0.0
        %1019 = vmatpush.msra.mxu0 0.0
        %1020 = vmatpush.msra.mxu0 0.0
        %1021 = vmatpush.msra.mxu0 0.0
        %1022 = vmatpush.msra.mxu0 0.0
        %1023 = vmatpush.msra.mxu0 0.0
        %1024 = vmatpush.msra.mxu0 0.0
        %1025 = vmatpush.msra.mxu0 0.0
        %1026 = vmatpush.msra.mxu0 0.0
        %1027 = vmatpush.msra.mxu0 0.0
        %1028 = vmatpush.msra.mxu0 0.0
        %1029 = vmatpush.msra.mxu0 0.0
        %1030 = vmatpush.msra.mxu0 0.0
        %v1031 = vand.u32 %v196, 4294901760
        %1032 = vmatpush.msra.mxu0 %v1031
        %v1033 = vand.u32 %v195, 4294901760
        %1034 = vmatpush.msra.mxu0 %v1033
        %v1035 = vand.u32 %v1015, 4294901760
        %v1036 = vsub.f32 %v1015, %v1035
        %v1037 = vand.u32 %v1036, 4294901760
        %v1038 = vsub.f32 %v1036, %v1037
        %v1039 = vand.u32 %v1038, 4294901760
        %1040 = vmatmul.f32.gmra.mxu0 %v1039
        %v1041 = vpop.f32.mrf.mxu0
        %v1042 = vadd.f32 0.0, %v1041
        %1043 = vdwg.mxu0
        %1044 = vmatpush.msra.mxu0 0.0
        %1045 = vmatpush.msra.mxu0 0.0
        %1046 = vmatpush.msra.mxu0 0.0
        %1047 = vmatpush.msra.mxu0 0.0
        %1048 = vmatpush.msra.mxu0 0.0
        %1049 = vmatpush.msra.mxu0 0.0
        %1050 = vmatpush.msra.mxu0 0.0
        %1051 = vmatpush.msra.mxu0 0.0
        %1052 = vmatpush.msra.mxu0 0.0
        %1053 = vmatpush.msra.mxu0 0.0
        %1054 = vmatpush.msra.mxu0 0.0
        %1055 = vmatpush.msra.mxu0 0.0
        %1056 = vmatpush.msra.mxu0 0.0
        %1057 = vmatpush.msra.mxu0 0.0
        %v1058 = vand.u32 %v196, 4294901760
        %v1059 = vsub.f32 %v196, %v1058
        %v1060 = vand.u32 %v1059, 4294901760
        %v1061 = vsub.f32 %v1059, %v1060
        %v1062 = vand.u32 %v1061, 4294901760
        %1063 = vmatpush.msra.mxu0 %v1062
        %v1064 = vand.u32 %v195, 4294901760
        %v1065 = vsub.f32 %v195, %v1064
        %v1066 = vand.u32 %v1065, 4294901760
        %v1067 = vsub.f32 %v1065, %v1066
        %v1068 = vand.u32 %v1067, 4294901760
        %1069 = vmatpush.msra.mxu0 %v1068
        %v1070 = vand.u32 %v1015, 4294901760
        %1071 = vmatmul.f32.gmra.mxu0 %v1070
        %v1072 = vpop.f32.mrf.mxu0
        %v1073 = vadd.f32 %v1042, %v1072
        %1074 = vdwg.mxu0
        %1075 = vmatpush.msra.mxu0 0.0
        %1076 = vmatpush.msra.mxu0 0.0
        %1077 = vmatpush.msra.mxu0 0.0
        %1078 = vmatpush.msra.mxu0 0.0
        %1079 = vmatpush.msra.mxu0 0.0
        %1080 = vmatpush.msra.mxu0 0.0
        %1081 = vmatpush.msra.mxu0 0.0
        %1082 = vmatpush.msra.mxu0 0.0
        %1083 = vmatpush.msra.mxu0 0.0
        %1084 = vmatpush.msra.mxu0 0.0
        %1085 = vmatpush.msra.mxu0 0.0
        %1086 = vmatpush.msra.mxu0 0.0
        %1087 = vmatpush.msra.mxu0 0.0
        %1088 = vmatpush.msra.mxu0 0.0
        %v1089 = vand.u32 %v196, 4294901760
        %v1090 = vsub.f32 %v196, %v1089
        %1091 = vmatpush.msra.mxu0 %v1090
        %v1092 = vand.u32 %v195, 4294901760
        %v1093 = vsub.f32 %v195, %v1092
        %1094 = vmatpush.msra.mxu0 %v1093
        %v1095 = vand.u32 %v1015, 4294901760
        %v1096 = vsub.f32 %v1015, %v1095
        %1097 = vmatmul.f32.gmra.mxu0 %v1096
        %v1098 = vpop.f32.mrf.mxu0
        %v1099 = vadd.f32 %v1073, %v1098
        %1100 = vdwg.mxu0
        %1101 = vmatpush.msra.mxu0 0.0
        %1102 = vmatpush.msra.mxu0 0.0
        %1103 = vmatpush.msra.mxu0 0.0
        %1104 = vmatpush.msra.mxu0 0.0
        %1105 = vmatpush.msra.mxu0 0.0
        %1106 = vmatpush.msra.mxu0 0.0
        %1107 = vmatpush.msra.mxu0 0.0
        %1108 = vmatpush.msra.mxu0 0.0
        %1109 = vmatpush.msra.mxu0 0.0
        %1110 = vmatpush.msra.mxu0 0.0
        %1111 = vmatpush.msra.mxu0 0.0
        %1112 = vmatpush.msra.mxu0 0.0
        %1113 = vmatpush.msra.mxu0 0.0
        %1114 = vmatpush.msra.mxu0 0.0
        %v1115 = vand.u32 %v196, 4294901760
        %1116 = vmatpush.msra.mxu0 %v1115
        %v1117 = vand.u32 %v195, 4294901760
        %1118 = vmatpush.msra.mxu0 %v1117
        %v1119 = vand.u32 %v1015, 4294901760
        %v1120 = vsub.f32 %v1015, %v1119
        %v1121 = vand.u32 %v1120, 4294901760
        %1122 = vmatmul.f32.gmra.mxu0 %v1121
        %v1123 = vpop.f32.mrf.mxu0
        %v1124 = vadd.f32 %v1099, %v1123
        %1125 = vdwg.mxu0
        %1126 = vmatpush.msra.mxu0 0.0
        %1127 = vmatpush.msra.mxu0 0.0
        %1128 = vmatpush.msra.mxu0 0.0
        %1129 = vmatpush.msra.mxu0 0.0
        %1130 = vmatpush.msra.mxu0 0.0
        %1131 = vmatpush.msra.mxu0 0.0
        %1132 = vmatpush.msra.mxu0 0.0
        %1133 = vmatpush.msra.mxu0 0.0
        %1134 = vmatpush.msra.mxu0 0.0
        %1135 = vmatpush.msra.mxu0 0.0
        %1136 = vmatpush.msra.mxu0 0.0
        %1137 = vmatpush.msra.mxu0 0.0
        %1138 = vmatpush.msra.mxu0 0.0
        %1139 = vmatpush.msra.mxu0 0.0
        %v1140 = vand.u32 %v196, 4294901760
        %v1141 = vsub.f32 %v196, %v1140
        %v1142 = vand.u32 %v1141, 4294901760
        %1143 = vmatpush.msra.mxu0 %v1142
        %v1144 = vand.u32 %v195, 4294901760
        %v1145 = vsub.f32 %v195, %v1144
        %v1146 = vand.u32 %v1145, 4294901760
        %1147 = vmatpush.msra.mxu0 %v1146
        %v1148 = vand.u32 %v1015, 4294901760
        %1149 = vmatmul.f32.gmra.mxu0 %v1148
        %v1150 = vpop.f32.mrf.mxu0
        %v1151 = vadd.f32 %v1124, %v1150
        %1152 = vdwg.mxu0
        %1153 = vmatpush.msra.mxu0 0.0
        %1154 = vmatpush.msra.mxu0 0.0
        %1155 = vmatpush.msra.mxu0 0.0
        %1156 = vmatpush.msra.mxu0 0.0
        %1157 = vmatpush.msra.mxu0 0.0
        %1158 = vmatpush.msra.mxu0 0.0
        %1159 = vmatpush.msra.mxu0 0.0
        %1160 = vmatpush.msra.mxu0 0.0
        %1161 = vmatpush.msra.mxu0 0.0
        %1162 = vmatpush.msra.mxu0 0.0
        %1163 = vmatpush.msra.mxu0 0.0
        %1164 = vmatpush.msra.mxu0 0.0
        %1165 = vmatpush.msra.mxu0 0.0
        %1166 = vmatpush.msra.mxu0 0.0
        %v1167 = vand.u32 %v196, 4294901760
        %1168 = vmatpush.msra.mxu0 %v1167
        %v1169 = vand.u32 %v195, 4294901760
        %1170 = vmatpush.msra.mxu0 %v1169
        %v1171 = vand.u32 %v1015, 4294901760
        %1172 = vmatmul.f32.gmra.mxu0 %v1171
        %v1173 = vpop.f32.mrf.mxu0
        %v1174 = vadd.f32 %v1151, %v1173
        %1175 = vdwg.mxu0
        %s1176 = scalar_lea.vmem %s191, 16 [#allocation5]
        %1177 = vst.msk [vmem:[%s1176] sm:$0xff] %vm524, %v1174
        %s1178 = scalar_lea.vmem %s168, 48 [#allocation2]
        %v1179 = vld [vmem:[%s1178] sm:$0xff]
        %v1180 = vld [vmem:[%s1178 + $0x8] sm:$0xff]
        %1181 = vmatpush.msra.mxu0 0.0
        %1182 = vmatpush.msra.mxu0 0.0
        %1183 = vmatpush.msra.mxu0 0.0
        %1184 = vmatpush.msra.mxu0 0.0
        %1185 = vmatpush.msra.mxu0 0.0
        %1186 = vmatpush.msra.mxu0 0.0
        %1187 = vmatpush.msra.mxu0 0.0
        %1188 = vmatpush.msra.mxu0 0.0
        %1189 = vmatpush.msra.mxu0 0.0
        %1190 = vmatpush.msra.mxu0 0.0
        %1191 = vmatpush.msra.mxu0 0.0
        %1192 = vmatpush.msra.mxu0 0.0
        %1193 = vmatpush.msra.mxu0 0.0
        %1194 = vmatpush.msra.mxu0 0.0
        %v1195 = vand.u32 %v1180, 4294901760
        %1196 = vmatpush.msra.mxu0 %v1195
        %v1197 = vand.u32 %v1179, 4294901760
        %1198 = vmatpush.msra.mxu0 %v1197
        %v1199 = vand.u32 %v201, 4294901760
        %v1200 = vsub.f32 %v201, %v1199
        %v1201 = vand.u32 %v1200, 4294901760
        %v1202 = vsub.f32 %v1200, %v1201
        %v1203 = vand.u32 %v1202, 4294901760
        %1204 = vmatmul.f32.gmra.mxu0 %v1203
        %v1205 = vpop.f32.mrf.mxu0
        %v1206 = vadd.f32 0.0, %v1205
        %1207 = vdwg.mxu0
        %1208 = vmatpush.msra.mxu0 0.0
        %1209 = vmatpush.msra.mxu0 0.0
        %1210 = vmatpush.msra.mxu0 0.0
        %1211 = vmatpush.msra.mxu0 0.0
        %1212 = vmatpush.msra.mxu0 0.0
        %1213 = vmatpush.msra.mxu0 0.0
        %1214 = vmatpush.msra.mxu0 0.0
        %1215 = vmatpush.msra.mxu0 0.0
        %1216 = vmatpush.msra.mxu0 0.0
        %1217 = vmatpush.msra.mxu0 0.0
        %1218 = vmatpush.msra.mxu0 0.0
        %1219 = vmatpush.msra.mxu0 0.0
        %1220 = vmatpush.msra.mxu0 0.0
        %1221 = vmatpush.msra.mxu0 0.0
        %v1222 = vand.u32 %v1180, 4294901760
        %v1223 = vsub.f32 %v1180, %v1222
        %v1224 = vand.u32 %v1223, 4294901760
        %v1225 = vsub.f32 %v1223, %v1224
        %v1226 = vand.u32 %v1225, 4294901760
        %1227 = vmatpush.msra.mxu0 %v1226
        %v1228 = vand.u32 %v1179, 4294901760
        %v1229 = vsub.f32 %v1179, %v1228
        %v1230 = vand.u32 %v1229, 4294901760
        %v1231 = vsub.f32 %v1229, %v1230
        %v1232 = vand.u32 %v1231, 4294901760
        %1233 = vmatpush.msra.mxu0 %v1232
        %v1234 = vand.u32 %v201, 4294901760
        %1235 = vmatmul.f32.gmra.mxu0 %v1234
        %v1236 = vpop.f32.mrf.mxu0
        %v1237 = vadd.f32 %v1206, %v1236
        %1238 = vdwg.mxu0
        %1239 = vmatpush.msra.mxu0 0.0
        %1240 = vmatpush.msra.mxu0 0.0
        %1241 = vmatpush.msra.mxu0 0.0
        %1242 = vmatpush.msra.mxu0 0.0
        %1243 = vmatpush.msra.mxu0 0.0
        %1244 = vmatpush.msra.mxu0 0.0
        %1245 = vmatpush.msra.mxu0 0.0
        %1246 = vmatpush.msra.mxu0 0.0
        %1247 = vmatpush.msra.mxu0 0.0
        %1248 = vmatpush.msra.mxu0 0.0
        %1249 = vmatpush.msra.mxu0 0.0
        %1250 = vmatpush.msra.mxu0 0.0
        %1251 = vmatpush.msra.mxu0 0.0
        %1252 = vmatpush.msra.mxu0 0.0
        %v1253 = vand.u32 %v1180, 4294901760
        %v1254 = vsub.f32 %v1180, %v1253
        %1255 = vmatpush.msra.mxu0 %v1254
        %v1256 = vand.u32 %v1179, 4294901760
        %v1257 = vsub.f32 %v1179, %v1256
        %1258 = vmatpush.msra.mxu0 %v1257
        %v1259 = vand.u32 %v201, 4294901760
        %v1260 = vsub.f32 %v201, %v1259
        %1261 = vmatmul.f32.gmra.mxu0 %v1260
        %v1262 = vpop.f32.mrf.mxu0
        %v1263 = vadd.f32 %v1237, %v1262
        %1264 = vdwg.mxu0
        %1265 = vmatpush.msra.mxu0 0.0
        %1266 = vmatpush.msra.mxu0 0.0
        %1267 = vmatpush.msra.mxu0 0.0
        %1268 = vmatpush.msra.mxu0 0.0
        %1269 = vmatpush.msra.mxu0 0.0
        %1270 = vmatpush.msra.mxu0 0.0
        %1271 = vmatpush.msra.mxu0 0.0
        %1272 = vmatpush.msra.mxu0 0.0
        %1273 = vmatpush.msra.mxu0 0.0
        %1274 = vmatpush.msra.mxu0 0.0
        %1275 = vmatpush.msra.mxu0 0.0
        %1276 = vmatpush.msra.mxu0 0.0
        %1277 = vmatpush.msra.mxu0 0.0
        %1278 = vmatpush.msra.mxu0 0.0
        %v1279 = vand.u32 %v1180, 4294901760
        %1280 = vmatpush.msra.mxu0 %v1279
        %v1281 = vand.u32 %v1179, 4294901760
        %1282 = vmatpush.msra.mxu0 %v1281
        %v1283 = vand.u32 %v201, 4294901760
        %v1284 = vsub.f32 %v201, %v1283
        %v1285 = vand.u32 %v1284, 4294901760
        %1286 = vmatmul.f32.gmra.mxu0 %v1285
        %v1287 = vpop.f32.mrf.mxu0
        %v1288 = vadd.f32 %v1263, %v1287
        %1289 = vdwg.mxu0
        %1290 = vmatpush.msra.mxu0 0.0
        %1291 = vmatpush.msra.mxu0 0.0
        %1292 = vmatpush.msra.mxu0 0.0
        %1293 = vmatpush.msra.mxu0 0.0
        %1294 = vmatpush.msra.mxu0 0.0
        %1295 = vmatpush.msra.mxu0 0.0
        %1296 = vmatpush.msra.mxu0 0.0
        %1297 = vmatpush.msra.mxu0 0.0
        %1298 = vmatpush.msra.mxu0 0.0
        %1299 = vmatpush.msra.mxu0 0.0
        %1300 = vmatpush.msra.mxu0 0.0
        %1301 = vmatpush.msra.mxu0 0.0
        %1302 = vmatpush.msra.mxu0 0.0
        %1303 = vmatpush.msra.mxu0 0.0
        %v1304 = vand.u32 %v1180, 4294901760
        %v1305 = vsub.f32 %v1180, %v1304
        %v1306 = vand.u32 %v1305, 4294901760
        %1307 = vmatpush.msra.mxu0 %v1306
        %v1308 = vand.u32 %v1179, 4294901760
        %v1309 = vsub.f32 %v1179, %v1308
        %v1310 = vand.u32 %v1309, 4294901760
        %1311 = vmatpush.msra.mxu0 %v1310
        %v1312 = vand.u32 %v201, 4294901760
        %1313 = vmatmul.f32.gmra.mxu0 %v1312
        %v1314 = vpop.f32.mrf.mxu0
        %v1315 = vadd.f32 %v1288, %v1314
        %1316 = vdwg.mxu0
        %1317 = vmatpush.msra.mxu0 0.0
        %1318 = vmatpush.msra.mxu0 0.0
        %1319 = vmatpush.msra.mxu0 0.0
        %1320 = vmatpush.msra.mxu0 0.0
        %1321 = vmatpush.msra.mxu0 0.0
        %1322 = vmatpush.msra.mxu0 0.0
        %1323 = vmatpush.msra.mxu0 0.0
        %1324 = vmatpush.msra.mxu0 0.0
        %1325 = vmatpush.msra.mxu0 0.0
        %1326 = vmatpush.msra.mxu0 0.0
        %1327 = vmatpush.msra.mxu0 0.0
        %1328 = vmatpush.msra.mxu0 0.0
        %1329 = vmatpush.msra.mxu0 0.0
        %1330 = vmatpush.msra.mxu0 0.0
        %v1331 = vand.u32 %v1180, 4294901760
        %1332 = vmatpush.msra.mxu0 %v1331
        %v1333 = vand.u32 %v1179, 4294901760
        %1334 = vmatpush.msra.mxu0 %v1333
        %v1335 = vand.u32 %v201, 4294901760
        %1336 = vmatmul.f32.gmra.mxu0 %v1335
        %v1337 = vpop.f32.mrf.mxu0
        %v1338 = vadd.f32 %v1315, %v1337
        %1339 = vdwg.mxu0
        %v1341 = vsel %vm199, %v1338, 0
        %1343 = vmatpush.msra.mxu0 0.0
        %1344 = vmatpush.msra.mxu0 0.0
        %1345 = vmatpush.msra.mxu0 0.0
        %1346 = vmatpush.msra.mxu0 0.0
        %1347 = vmatpush.msra.mxu0 0.0
        %1348 = vmatpush.msra.mxu0 0.0
        %1349 = vmatpush.msra.mxu0 0.0
        %1350 = vmatpush.msra.mxu0 0.0
        %1351 = vmatpush.msra.mxu0 0.0
        %1352 = vmatpush.msra.mxu0 0.0
        %1353 = vmatpush.msra.mxu0 0.0
        %1354 = vmatpush.msra.mxu0 0.0
        %1355 = vmatpush.msra.mxu0 0.0
        %1356 = vmatpush.msra.mxu0 0.0
        %v1357 = vand.u32 %v196, 4294901760
        %1358 = vmatpush.msra.mxu0 %v1357
        %v1359 = vand.u32 %v195, 4294901760
        %1360 = vmatpush.msra.mxu0 %v1359
        %v1361 = vand.u32 %v1341, 4294901760
        %v1362 = vsub.f32 %v1341, %v1361
        %v1363 = vand.u32 %v1362, 4294901760
        %v1364 = vsub.f32 %v1362, %v1363
        %v1365 = vand.u32 %v1364, 4294901760
        %1366 = vmatmul.f32.gmra.mxu0 %v1365
        %v1367 = vpop.f32.mrf.mxu0
        %v1368 = vadd.f32 0.0, %v1367
        %1369 = vdwg.mxu0
        %1370 = vmatpush.msra.mxu0 0.0
        %1371 = vmatpush.msra.mxu0 0.0
        %1372 = vmatpush.msra.mxu0 0.0
        %1373 = vmatpush.msra.mxu0 0.0
        %1374 = vmatpush.msra.mxu0 0.0
        %1375 = vmatpush.msra.mxu0 0.0
        %1376 = vmatpush.msra.mxu0 0.0
        %1377 = vmatpush.msra.mxu0 0.0
        %1378 = vmatpush.msra.mxu0 0.0
        %1379 = vmatpush.msra.mxu0 0.0
        %1380 = vmatpush.msra.mxu0 0.0
        %1381 = vmatpush.msra.mxu0 0.0
        %1382 = vmatpush.msra.mxu0 0.0
        %1383 = vmatpush.msra.mxu0 0.0
        %v1384 = vand.u32 %v196, 4294901760
        %v1385 = vsub.f32 %v196, %v1384
        %v1386 = vand.u32 %v1385, 4294901760
        %v1387 = vsub.f32 %v1385, %v1386
        %v1388 = vand.u32 %v1387, 4294901760
        %1389 = vmatpush.msra.mxu0 %v1388
        %v1390 = vand.u32 %v195, 4294901760
        %v1391 = vsub.f32 %v195, %v1390
        %v1392 = vand.u32 %v1391, 4294901760
        %v1393 = vsub.f32 %v1391, %v1392
        %v1394 = vand.u32 %v1393, 4294901760
        %1395 = vmatpush.msra.mxu0 %v1394
        %v1396 = vand.u32 %v1341, 4294901760
        %1397 = vmatmul.f32.gmra.mxu0 %v1396
        %v1398 = vpop.f32.mrf.mxu0
        %v1399 = vadd.f32 %v1368, %v1398
        %1400 = vdwg.mxu0
        %1401 = vmatpush.msra.mxu0 0.0
        %1402 = vmatpush.msra.mxu0 0.0
        %1403 = vmatpush.msra.mxu0 0.0
        %1404 = vmatpush.msra.mxu0 0.0
        %1405 = vmatpush.msra.mxu0 0.0
        %1406 = vmatpush.msra.mxu0 0.0
        %1407 = vmatpush.msra.mxu0 0.0
        %1408 = vmatpush.msra.mxu0 0.0
        %1409 = vmatpush.msra.mxu0 0.0
        %1410 = vmatpush.msra.mxu0 0.0
        %1411 = vmatpush.msra.mxu0 0.0
        %1412 = vmatpush.msra.mxu0 0.0
        %1413 = vmatpush.msra.mxu0 0.0
        %1414 = vmatpush.msra.mxu0 0.0
        %v1415 = vand.u32 %v196, 4294901760
        %v1416 = vsub.f32 %v196, %v1415
        %1417 = vmatpush.msra.mxu0 %v1416
        %v1418 = vand.u32 %v195, 4294901760
        %v1419 = vsub.f32 %v195, %v1418
        %1420 = vmatpush.msra.mxu0 %v1419
        %v1421 = vand.u32 %v1341, 4294901760
        %v1422 = vsub.f32 %v1341, %v1421
        %1423 = vmatmul.f32.gmra.mxu0 %v1422
        %v1424 = vpop.f32.mrf.mxu0
        %v1425 = vadd.f32 %v1399, %v1424
        %1426 = vdwg.mxu0
        %1427 = vmatpush.msra.mxu0 0.0
        %1428 = vmatpush.msra.mxu0 0.0
        %1429 = vmatpush.msra.mxu0 0.0
        %1430 = vmatpush.msra.mxu0 0.0
        %1431 = vmatpush.msra.mxu0 0.0
        %1432 = vmatpush.msra.mxu0 0.0
        %1433 = vmatpush.msra.mxu0 0.0
        %1434 = vmatpush.msra.mxu0 0.0
        %1435 = vmatpush.msra.mxu0 0.0
        %1436 = vmatpush.msra.mxu0 0.0
        %1437 = vmatpush.msra.mxu0 0.0
        %1438 = vmatpush.msra.mxu0 0.0
        %1439 = vmatpush.msra.mxu0 0.0
        %1440 = vmatpush.msra.mxu0 0.0
        %v1441 = vand.u32 %v196, 4294901760
        %1442 = vmatpush.msra.mxu0 %v1441
        %v1443 = vand.u32 %v195, 4294901760
        %1444 = vmatpush.msra.mxu0 %v1443
        %v1445 = vand.u32 %v1341, 4294901760
        %v1446 = vsub.f32 %v1341, %v1445
        %v1447 = vand.u32 %v1446, 4294901760
        %1448 = vmatmul.f32.gmra.mxu0 %v1447
        %v1449 = vpop.f32.mrf.mxu0
        %v1450 = vadd.f32 %v1425, %v1449
        %1451 = vdwg.mxu0
        %1452 = vmatpush.msra.mxu0 0.0
        %1453 = vmatpush.msra.mxu0 0.0
        %1454 = vmatpush.msra.mxu0 0.0
        %1455 = vmatpush.msra.mxu0 0.0
        %1456 = vmatpush.msra.mxu0 0.0
        %1457 = vmatpush.msra.mxu0 0.0
        %1458 = vmatpush.msra.mxu0 0.0
        %1459 = vmatpush.msra.mxu0 0.0
        %1460 = vmatpush.msra.mxu0 0.0
        %1461 = vmatpush.msra.mxu0 0.0
        %1462 = vmatpush.msra.mxu0 0.0
        %1463 = vmatpush.msra.mxu0 0.0
        %1464 = vmatpush.msra.mxu0 0.0
        %1465 = vmatpush.msra.mxu0 0.0
        %v1466 = vand.u32 %v196, 4294901760
        %v1467 = vsub.f32 %v196, %v1466
        %v1468 = vand.u32 %v1467, 4294901760
        %1469 = vmatpush.msra.mxu0 %v1468
        %v1470 = vand.u32 %v195, 4294901760
        %v1471 = vsub.f32 %v195, %v1470
        %v1472 = vand.u32 %v1471, 4294901760
        %1473 = vmatpush.msra.mxu0 %v1472
        %v1474 = vand.u32 %v1341, 4294901760
        %1475 = vmatmul.f32.gmra.mxu0 %v1474
        %v1476 = vpop.f32.mrf.mxu0
        %v1477 = vadd.f32 %v1450, %v1476
        %1478 = vdwg.mxu0
        %1479 = vmatpush.msra.mxu0 0.0
        %1480 = vmatpush.msra.mxu0 0.0
        %1481 = vmatpush.msra.mxu0 0.0
        %1482 = vmatpush.msra.mxu0 0.0
        %1483 = vmatpush.msra.mxu0 0.0
        %1484 = vmatpush.msra.mxu0 0.0
        %1485 = vmatpush.msra.mxu0 0.0
        %1486 = vmatpush.msra.mxu0 0.0
        %1487 = vmatpush.msra.mxu0 0.0
        %1488 = vmatpush.msra.mxu0 0.0
        %1489 = vmatpush.msra.mxu0 0.0
        %1490 = vmatpush.msra.mxu0 0.0
        %1491 = vmatpush.msra.mxu0 0.0
        %1492 = vmatpush.msra.mxu0 0.0
        %v1493 = vand.u32 %v196, 4294901760
        %1494 = vmatpush.msra.mxu0 %v1493
        %v1495 = vand.u32 %v195, 4294901760
        %1496 = vmatpush.msra.mxu0 %v1495
        %v1497 = vand.u32 %v1341, 4294901760
        %1498 = vmatmul.f32.gmra.mxu0 %v1497
        %v1499 = vpop.f32.mrf.mxu0
        %v1500 = vadd.f32 %v1477, %v1499
        %1501 = vdwg.mxu0
        %s1502 = scalar_lea.vmem %s191, 24 [#allocation5]
        %1503 = vst.msk [vmem:[%s1502] sm:$0xff] %vm524, %v1500
        %s1504 = sand.u32 %s96, 1
        %s1505 = scalar_lea.sflag [#allocation4], %s1504
        %s1506 = sand.u32 %s96, 1
        %s1507 = smul.addr %s1506, 32
        %s1508 = scalar_lea.vmem [#allocation5], %s1507
        // Predicated region
        $region37: #{tpu_custom_call.1} parent=31 // pred_check
          %p1509 = pneg %p106
        $region38: #{tpu_custom_call.1} parent=31 // pred_check_branch
          %1511 = sbr.rel (%p1509) target = $region40
        $region39: #{tpu_custom_call.1} parent=31 // pred_region
          %s1512 = smul.u32 4, %s20
          %1514 = vsyncadd %s1505, 0
          %s1515 = smul.addr %s1512, 8
          %s1516 = scalar_lea.hbm %s3, %s1515
          %s1517 = sshll.u32 %s1508, 4
          %s1518 = int_to_ptr.vmem [resolvable:$true] %s1517
          %s1519 = sshll.u32 %s1516, 4
          %s1520 = int_to_ptr.hbm [resolvable:$true] %s1519
          %1525 = dma.vmem_to_hbm [thread:$0]  %s1518, 512, %s1520, %s1505, 128, 128, 8
        $region40: #{tpu_custom_call.1} parent=31 // pred_fallthru
          _
      $region32: #{tpu_custom_call.1} parent=5 // pred_fallthru
        _
      %p1526 = scmp.le.s32.totalorder 2, %s15
      // Predicated region
      $region41: #{tpu_custom_call.1} parent=5 // pred_check
        %p1527 = pneg %p1526
      $region42: #{tpu_custom_call.1} parent=5 // pred_check_branch
        %1529 = sbr.rel (%p1527) target = $region44
      $region43: #{tpu_custom_call.1} parent=5 // pred_region
        %s1530 = ssub.s32 %s15, 2
        // Predicated region
        $region45: #{tpu_custom_call.1} parent=43 // pred_check
          %p1531 = pneg %p112
        $region46: #{tpu_custom_call.1} parent=43 // pred_check_branch
          %1533 = sbr.rel (%p1531) target = $region48
        $region47: #{tpu_custom_call.1} parent=43 // pred_region
          %s1534 = sand.u32 %s97, 1
          %s1535 = scalar_lea.sflag [#allocation4], %s1534
          %s1536 = sand.u32 %s97, 1
          %s1537 = smul.addr %s1536, 32
          %s1538 = scalar_lea.vmem [#allocation5], %s1537
          %1540 = dma.done %s1535, 512
        $region48: #{tpu_custom_call.1} parent=43 // pred_fallthru
          _
      $region44: #{tpu_custom_call.1} parent=5 // pred_fallthru
        _
    $region6: #{tpu_custom_call.1} parent=1 // loop_footer
      %s19 = sadd.s32 1, %s15
    $region7: #{tpu_custom_call.1} parent=1 // loop_footer_branch
      %14 = sbr.rel target = $region3
    $region8: #{tpu_custom_call.1} parent=1 // loop_exit
      _
    %1541 = vsyncpa [#allocation3], 1
    %s1542 = scalar_lea.sflag [#allocation3], 1
    %1543 = vsyncpa %s1542, 1
    %1544 = vsyncpa [#allocation4], 1
    %s1545 = scalar_lea.sflag [#allocation4], 1
    %1546 = vsyncpa %s1545, 1

</llo_original>
